<compile_context>
chip_gen: v7x
topology: tpu7x:2x2x1
jax: 0.10.0
libtpu: 0.0.40
codegen_flags: <defaults>
</compile_context>

<pallas_src>
import functools

import jax
import jax.numpy as jnp
from jax.experimental import pallas as pl
from jax.experimental.pallas import tpu as pltpu

EPS = 1e-5


def _siamese_kernel(x_ref, w1_ref, w2_ref, w3_ref, gb_ref, o_ref, *,
                    bpb, batch, lane_pack):
    """x_ref: (bpb*batch, L) bf16 -- bpb independent branches stacked along rows.
    o_ref: (batch, bpb*L) if lane_pack else (bpb*batch, L), f32."""
    M = bpb * batch

    def batchnorm(h, gamma=None, beta=None):
        # h: (M, D) f32.  Training-mode BatchNorm1d per branch, folded into a single
        # per-feature scale/shift.  Stats reduction is the only place the (bpb, B, D)
        # view is formed; matmuls stay on the flat layout.
        D = h.shape[-1]
        h3 = h.reshape(bpb, batch, D)
        mean = jnp.mean(h3, axis=1, keepdims=True)                       # (bpb, 1, D)
        var = jnp.mean(h3 * h3, axis=1, keepdims=True) - mean * mean
        var = jnp.maximum(var, 0.0)          # single-pass variance can go slightly negative
        scale = jax.lax.rsqrt(var + EPS)                                 # EUP slot
        if gamma is not None:
            scale = scale * gamma                                        # (1, D) broadcasts
            shift = beta - mean * scale
        else:
            shift = -(mean * scale)
        return h3 * scale + shift                                        # (bpb, B, D) f32

    g1, be1 = gb_ref[0:1, :], gb_ref[1:2, :]
    g2, be2 = gb_ref[2:3, :], gb_ref[3:4, :]

    # fc1 -> norm1 -> relu   (bias dropped: exactly cancelled by BN mean subtraction)
    h = jnp.dot(x_ref[...], w1_ref[...], preferred_element_type=jnp.float32)
    h3 = batchnorm(h, g1, be1)
    h = jnp.maximum(h3, 0.0).astype(jnp.bfloat16).reshape(M, -1)
    # fc2 -> norm2 -> relu
    h = jnp.dot(h, w2_ref[...], preferred_element_type=jnp.float32)
    h3 = batchnorm(h, g2, be2)
    h = jnp.maximum(h3, 0.0).astype(jnp.bfloat16).reshape(M, -1)
    # fc3 -> norm3 (affine=False)
    h = jnp.dot(h, w3_ref[...], preferred_element_type=jnp.float32)
    h3 = batchnorm(h)                                                    # (bpb, B, L) f32

    if lane_pack:
        # L < 128: pack the bpb branch outputs side by side along the lane axis so the
        # written slab is >= 128 lanes wide; per-branch static-slice stores, no concat temp.
        L = h3.shape[-1]
        for j in range(bpb):
            o_ref[:, j * L:(j + 1) * L] = h3[j].astype(o_ref.dtype)
    else:
        # L >= 128: already lane-dense, store the flat block directly.
        o_ref[...] = h3.reshape(M, -1).astype(o_ref.dtype)


def siamese_forward(x, params, *, rows_target=256):
    """x: (n_branches, B, L) float32 -- n_branches independent SiameseNet.forward calls
    (each branch uses its own BatchNorm batch statistics).  Returns (n_branches, B, L) f32."""
    nb, B, L = x.shape
    H = 2 * L

    # --- choose branches-per-block: fill the MXU M-dim, keep the lane-packed store
    #     >= 128 lanes when L < 128, and keep >= 2 grid steps (v7x: both TensorCores).
    bpb = max(1, -(-rows_target // B))
    if L < 128:
        bpb = max(bpb, -(-128 // L))
    bpb = min(bpb, nb)
    if nb >= 2:
        bpb = min(bpb, -(-nb // 2))
    nb_pad = -(-nb // bpb) * bpb
    n_blocks = nb_pad // bpb
    M = bpb * B

    if nb_pad != nb:
        x = jnp.concatenate([x, jnp.zeros((nb_pad - nb, B, L), x.dtype)], axis=0)

    # Flat block layout and bf16 operands for the MXU (BN math stays f32 in-kernel).
    x_flat = x.reshape(n_blocks, M, L).astype(jnp.bfloat16)
    w1 = params["w1"].astype(jnp.bfloat16)
    w2 = params["w2"].astype(jnp.bfloat16)
    w3 = params["w3"].astype(jnp.bfloat16)
    gb = params["gb"]                                        # (4, H) f32

    lane_pack = L < 128
    if lane_pack:
        out_shape = jax.ShapeDtypeStruct((n_blocks, B, bpb * L), jnp.float32)
        out_spec = pl.BlockSpec((None, B, bpb * L), lambda i: (i, 0, 0))
    else:
        out_shape = jax.ShapeDtypeStruct((n_blocks, M, L), jnp.float32)
        out_spec = pl.BlockSpec((None, M, L), lambda i: (i, 0, 0))

    const2d = lambda i: (0, 0)   # constant block: no per-step re-DMA of weights

    def weight_specs(single_buffer):
        kw = {"pipeline_mode": pl.Buffered(1)} if single_buffer else {}
        return [
            pl.BlockSpec((L, H), const2d, **kw),
            pl.BlockSpec((H, H), const2d, **kw),
            pl.BlockSpec((H, L), const2d, **kw),
            pl.BlockSpec((4, H), const2d, **kw),
        ]

    # Explicit VMEM budget: resident bf16 weights (+gb), double-buffered input/output
    # blocks, f32 activation working set; 2x headroom, clamped to [16 MiB, 64 MiB]
    # (v5e scoped default is 16 MiB; v7x physical VMEM is 64 MiB).
    bytes_weights = 2 * (L * H + H * H + H * L) + 4 * (4 * H)
    bytes_io = 2 * (M * L * 2) + 2 * (M * L * 4)
    bytes_act = 4 * (M * H * 4)
    vmem_limit = int(min(64 << 20, max(16 << 20, 2 * (bytes_weights + bytes_io + bytes_act))))

    kernel = functools.partial(_siamese_kernel, bpb=bpb, batch=B, lane_pack=lane_pack)

    def run(single_buffer):
        return pl.pallas_call(
            kernel,
            out_shape=out_shape,
            grid=(n_blocks,),
            in_specs=[pl.BlockSpec((None, M, L), lambda i: (i, 0, 0))] + weight_specs(single_buffer),
            out_specs=out_spec,
            compiler_params=pltpu.CompilerParams(
                dimension_semantics=("parallel",),        # branch-blocks across TensorCores (v7x)
                vmem_limit_bytes=vmem_limit,
            ),
        )(x_flat, w1, w2, w3, gb)

    try:
        out = run(True)
    except Exception:
        # pipeline_mode=pl.Buffered(1) unsupported on this JAX build: default double buffering.
        out = run(False)

    if lane_pack:
        # Undo lane packing: (n_blocks, B, bpb*L) -> (nb_pad, B, L).
        out = out.reshape(n_blocks, B, bpb, L)
        out = jnp.transpose(out, (0, 2, 1, 3)).reshape(nb_pad, B, L)
    else:
        out = out.reshape(nb_pad, B, L)
    return out[:nb]


def init_params(key, latent_size):
    """Shapes match the PyTorch module; Linear weights stored transposed as (in, out).
    Biases are kept (module fidelity / reference) even though the kernel skips them.
    BN gamma/beta are randomized (PyTorch inits them to 1/0) so the folded affine path
    is actually exercised by the correctness check."""
    L, H = latent_size, latent_size * 2
    keys = jax.random.split(key, 10)

    def linear(kw, kb, fan_in, fan_out):
        bound = 1.0 / (fan_in ** 0.5)
        w = jax.random.uniform(kw, (fan_in, fan_out), jnp.float32, -bound, bound)
        b = jax.random.uniform(kb, (1, fan_out), jnp.float32, -bound, bound)
        return w, b

    w1, b1 = linear(keys[0], keys[1], L, H)
    w2, b2 = linear(keys[2], keys[3], H, H)
    w3, b3 = linear(keys[4], keys[5], H, L)
    g1 = 1.0 + 0.1 * jax.random.normal(keys[6], (1, H), jnp.float32)
    be1 = 0.1 * jax.random.normal(keys[7], (1, H), jnp.float32)
    g2 = 1.0 + 0.1 * jax.random.normal(keys[8], (1, H), jnp.float32)
    be2 = 0.1 * jax.random.normal(keys[9], (1, H), jnp.float32)
    return {
        "w1": w1, "b1": b1, "g1": g1, "be1": be1,
        "w2": w2, "b2": b2, "g2": g2, "be2": be2,
        "w3": w3, "b3": b3,
        # packed (gamma1, beta1, gamma2, beta2) -> a single kernel operand
        "gb": jnp.concatenate([g1, be1, g2, be2], axis=0),
    }


def siamese_reference(x, p):
    """Pure-JAX f32 reference: literal translation of the PyTorch forward (with biases and
    two-pass variance), applied independently per branch."""
    def bn(h, g=None, b=None):
        m = jnp.mean(h, axis=0, keepdims=True)
        v = jnp.mean((h - m) ** 2, axis=0, keepdims=True)
        hn = (h - m) / jnp.sqrt(v + EPS)
        return hn * g + b if g is not None else hn

    def one_branch(xb):
        h = jnp.maximum(bn(xb @ p["w1"] + p["b1"], p["g1"], p["be1"]), 0.0)
        h = jnp.maximum(bn(h @ p["w2"] + p["b2"], p["g2"], p["be2"]), 0.0)
        return bn(h @ p["w3"] + p["b3"])

    return jax.vmap(one_branch)(x)


if __name__ == "__main__":
    latent_size = 32      # L; hidden H = 64
    batch = 8             # per-branch BatchNorm batch
    n_branches = 8        # e.g. both Siamese branches of 4 mini-batches

    key = jax.random.PRNGKey(0)
    kx, kp = jax.random.split(key)
    x = jax.random.normal(kx, (n_branches, batch, latent_size), jnp.float32)
    params = init_params(kp, latent_size)

    out = jax.block_until_ready(siamese_forward(x, params))
    ref = siamese_reference(x, params)

    assert out.shape == (n_branches, batch, latent_size)
    # bf16 weights/activations in the kernel vs. f32 reference -> bf16-appropriate tolerance.
    assert jnp.allclose(out, ref, atol=5e-2, rtol=5e-2), "mismatch vs JAX reference"
    print("KERNEL_OK")
</pallas_src>

<mosaic_0001>
module attributes {stable_mosaic.version = 11 : i64} {
  func.func @_siamese_kernel(%arg0: i32, %arg1: memref<1x32x32xbf16, #tpu.memory_space<vmem>>, %arg2: memref<32x64xbf16, #tpu.memory_space<vmem>>, %arg3: memref<64x64xbf16, #tpu.memory_space<vmem>>, %arg4: memref<64x32xbf16, #tpu.memory_space<vmem>>, %arg5: memref<4x64xf32, #tpu.memory_space<vmem>>, %arg6: memref<1x8x128xf32, #tpu.memory_space<vmem>>) attributes {dimension_semantics = [#tpu.dimension_semantics<parallel>], iteration_bounds = array<i64: 2>, scalar_prefetch = 0 : i64, scratch_operands = 0 : i64, tpu.core_type = #tpu.core_type<tc>, window_params = [{transform_indices = @transform_0, window_bounds = array<i64: 1, 32, 32>}, {pipeline_mode = #tpu.pipeline_mode<synchronous>, transform_indices = @transform_1, window_bounds = array<i64: 32, 64>}, {pipeline_mode = #tpu.pipeline_mode<synchronous>, transform_indices = @transform_2, window_bounds = array<i64: 64, 64>}, {pipeline_mode = #tpu.pipeline_mode<synchronous>, transform_indices = @transform_3, window_bounds = array<i64: 64, 32>}, {pipeline_mode = #tpu.pipeline_mode<synchronous>, transform_indices = @transform_4, window_bounds = array<i64: 4, 64>}, {transform_indices = @transform_5, window_bounds = array<i64: 1, 8, 128>}]} {
    %c0 = arith.constant 0 : index
    %c0_0 = arith.constant 0 : index
    %0 = vector.load %arg5[%c0, %c0_0] : memref<4x64xf32, #tpu.memory_space<vmem>>, vector<1x64xf32>
    %c1 = arith.constant 1 : index
    %c0_1 = arith.constant 0 : index
    %1 = vector.load %arg5[%c1, %c0_1] : memref<4x64xf32, #tpu.memory_space<vmem>>, vector<1x64xf32>
    %c2 = arith.constant 2 : index
    %c0_2 = arith.constant 0 : index
    %2 = vector.load %arg5[%c2, %c0_2] : memref<4x64xf32, #tpu.memory_space<vmem>>, vector<1x64xf32>
    %c3 = arith.constant 3 : index
    %c0_3 = arith.constant 0 : index
    %3 = vector.load %arg5[%c3, %c0_3] : memref<4x64xf32, #tpu.memory_space<vmem>>, vector<1x64xf32>
    %c0_4 = arith.constant 0 : index
    %c0_5 = arith.constant 0 : index
    %c0_6 = arith.constant 0 : index
    %4 = vector.load %arg1[%c0_4, %c0_5, %c0_6] : memref<1x32x32xbf16, #tpu.memory_space<vmem>>, vector<1x32x32xbf16>
    %5 = vector.shape_cast %4 : vector<1x32x32xbf16> to vector<32x32xbf16>
    %c0_7 = arith.constant 0 : index
    %c0_8 = arith.constant 0 : index
    %6 = vector.load %arg2[%c0_7, %c0_8] : memref<32x64xbf16, #tpu.memory_space<vmem>>, vector<32x64xbf16>
    %cst = arith.constant dense<0.000000e+00> : vector<32x64xf32>
    %7 = tpu.matmul %5, %6, %cst {dimension_numbers = #tpu.dot_dimension_numbers<[1], [0], [0], [1], [0, 0, 1, 1], [], []>} : vector<32x32xbf16>, vector<32x64xbf16>, vector<32x64xf32> -> vector<32x64xf32>
    %8 = vector.shape_cast %7 : vector<32x64xf32> to vector<4x8x64xf32>
    %cst_9 = arith.constant dense<0.000000e+00> : vector<4x64xf32>
    %9 = vector.multi_reduction <add>, %8, %cst_9 [1] : vector<4x8x64xf32> to vector<4x64xf32>
    %10 = vector.shape_cast %9 : vector<4x64xf32> to vector<4x1x64xf32>
    %cst_10 = arith.constant 8.000000e+00 : f32
    %11 = vector.broadcast %cst_10 : f32 to vector<4x1x64xf32>
    %12 = arith.divf %10, %11 : vector<4x1x64xf32>
    %13 = arith.mulf %8, %8 : vector<4x8x64xf32>
    %cst_11 = arith.constant dense<0.000000e+00> : vector<4x64xf32>
    %14 = vector.multi_reduction <add>, %13, %cst_11 [1] : vector<4x8x64xf32> to vector<4x64xf32>
    %15 = vector.shape_cast %14 : vector<4x64xf32> to vector<4x1x64xf32>
    %cst_12 = arith.constant 8.000000e+00 : f32
    %16 = vector.broadcast %cst_12 : f32 to vector<4x1x64xf32>
    %17 = arith.divf %15, %16 : vector<4x1x64xf32>
    %18 = arith.mulf %12, %12 : vector<4x1x64xf32>
    %19 = arith.subf %17, %18 : vector<4x1x64xf32>
    %cst_13 = arith.constant 0.000000e+00 : f32
    %20 = vector.broadcast %cst_13 : f32 to vector<4x1x64xf32>
    %21 = arith.maximumf %19, %20 : vector<4x1x64xf32>
    %cst_14 = arith.constant 9.99999974E-6 : f32
    %22 = vector.broadcast %cst_14 : f32 to vector<4x1x64xf32>
    %23 = arith.addf %21, %22 : vector<4x1x64xf32>
    %24 = math.rsqrt %23 : vector<4x1x64xf32>
    %25 = vector.shape_cast %0 : vector<1x64xf32> to vector<1x1x64xf32>
    %26 = vector.broadcast %25 : vector<1x1x64xf32> to vector<4x1x64xf32>
    %27 = arith.mulf %24, %26 : vector<4x1x64xf32>
    %28 = arith.mulf %12, %27 : vector<4x1x64xf32>
    %29 = vector.shape_cast %1 : vector<1x64xf32> to vector<1x1x64xf32>
    %30 = vector.broadcast %29 : vector<1x1x64xf32> to vector<4x1x64xf32>
    %31 = arith.subf %30, %28 : vector<4x1x64xf32>
    %32 = vector.broadcast %27 : vector<4x1x64xf32> to vector<4x8x64xf32>
    %33 = arith.mulf %8, %32 : vector<4x8x64xf32>
    %34 = vector.broadcast %31 : vector<4x1x64xf32> to vector<4x8x64xf32>
    %35 = arith.addf %33, %34 : vector<4x8x64xf32>
    %cst_15 = arith.constant 0.000000e+00 : f32
    %36 = vector.broadcast %cst_15 : f32 to vector<4x8x64xf32>
    %37 = arith.maximumf %35, %36 : vector<4x8x64xf32>
    %38 = arith.truncf %37 : vector<4x8x64xf32> to vector<4x8x64xbf16>
    %39 = vector.shape_cast %38 : vector<4x8x64xbf16> to vector<32x64xbf16>
    %c0_16 = arith.constant 0 : index
    %c0_17 = arith.constant 0 : index
    %40 = vector.load %arg3[%c0_16, %c0_17] : memref<64x64xbf16, #tpu.memory_space<vmem>>, vector<64x64xbf16>
    %cst_18 = arith.constant dense<0.000000e+00> : vector<32x64xf32>
    %41 = tpu.matmul %39, %40, %cst_18 {dimension_numbers = #tpu.dot_dimension_numbers<[1], [0], [0], [1], [0, 0, 1, 1], [], []>} : vector<32x64xbf16>, vector<64x64xbf16>, vector<32x64xf32> -> vector<32x64xf32>
    %42 = vector.shape_cast %41 : vector<32x64xf32> to vector<4x8x64xf32>
    %cst_19 = arith.constant dense<0.000000e+00> : vector<4x64xf32>
    %43 = vector.multi_reduction <add>, %42, %cst_19 [1] : vector<4x8x64xf32> to vector<4x64xf32>
    %44 = vector.shape_cast %43 : vector<4x64xf32> to vector<4x1x64xf32>
    %cst_20 = arith.constant 8.000000e+00 : f32
    %45 = vector.broadcast %cst_20 : f32 to vector<4x1x64xf32>
    %46 = arith.divf %44, %45 : vector<4x1x64xf32>
    %47 = arith.mulf %42, %42 : vector<4x8x64xf32>
    %cst_21 = arith.constant dense<0.000000e+00> : vector<4x64xf32>
    %48 = vector.multi_reduction <add>, %47, %cst_21 [1] : vector<4x8x64xf32> to vector<4x64xf32>
    %49 = vector.shape_cast %48 : vector<4x64xf32> to vector<4x1x64xf32>
    %cst_22 = arith.constant 8.000000e+00 : f32
    %50 = vector.broadcast %cst_22 : f32 to vector<4x1x64xf32>
    %51 = arith.divf %49, %50 : vector<4x1x64xf32>
    %52 = arith.mulf %46, %46 : vector<4x1x64xf32>
    %53 = arith.subf %51, %52 : vector<4x1x64xf32>
    %cst_23 = arith.constant 0.000000e+00 : f32
    %54 = vector.broadcast %cst_23 : f32 to vector<4x1x64xf32>
    %55 = arith.maximumf %53, %54 : vector<4x1x64xf32>
    %cst_24 = arith.constant 9.99999974E-6 : f32
    %56 = vector.broadcast %cst_24 : f32 to vector<4x1x64xf32>
    %57 = arith.addf %55, %56 : vector<4x1x64xf32>
    %58 = math.rsqrt %57 : vector<4x1x64xf32>
    %59 = vector.shape_cast %2 : vector<1x64xf32> to vector<1x1x64xf32>
    %60 = vector.broadcast %59 : vector<1x1x64xf32> to vector<4x1x64xf32>
    %61 = arith.mulf %58, %60 : vector<4x1x64xf32>
    %62 = arith.mulf %46, %61 : vector<4x1x64xf32>
    %63 = vector.shape_cast %3 : vector<1x64xf32> to vector<1x1x64xf32>
    %64 = vector.broadcast %63 : vector<1x1x64xf32> to vector<4x1x64xf32>
    %65 = arith.subf %64, %62 : vector<4x1x64xf32>
    %66 = vector.broadcast %61 : vector<4x1x64xf32> to vector<4x8x64xf32>
    %67 = arith.mulf %42, %66 : vector<4x8x64xf32>
    %68 = vector.broadcast %65 : vector<4x1x64xf32> to vector<4x8x64xf32>
    %69 = arith.addf %67, %68 : vector<4x8x64xf32>
    %cst_25 = arith.constant 0.000000e+00 : f32
    %70 = vector.broadcast %cst_25 : f32 to vector<4x8x64xf32>
    %71 = arith.maximumf %69, %70 : vector<4x8x64xf32>
    %72 = arith.truncf %71 : vector<4x8x64xf32> to vector<4x8x64xbf16>
    %73 = vector.shape_cast %72 : vector<4x8x64xbf16> to vector<32x64xbf16>
    %c0_26 = arith.constant 0 : index
    %c0_27 = arith.constant 0 : index
    %74 = vector.load %arg4[%c0_26, %c0_27] : memref<64x32xbf16, #tpu.memory_space<vmem>>, vector<64x32xbf16>
    %cst_28 = arith.constant dense<0.000000e+00> : vector<32x32xf32>
    %75 = tpu.matmul %73, %74, %cst_28 {dimension_numbers = #tpu.dot_dimension_numbers<[1], [0], [0], [1], [0, 0, 1, 1], [], []>} : vector<32x64xbf16>, vector<64x32xbf16>, vector<32x32xf32> -> vector<32x32xf32>
    %76 = vector.shape_cast %75 : vector<32x32xf32> to vector<4x8x32xf32>
    %cst_29 = arith.constant dense<0.000000e+00> : vector<4x32xf32>
    %77 = vector.multi_reduction <add>, %76, %cst_29 [1] : vector<4x8x32xf32> to vector<4x32xf32>
    %78 = vector.shape_cast %77 : vector<4x32xf32> to vector<4x1x32xf32>
    %cst_30 = arith.constant 8.000000e+00 : f32
    %79 = vector.broadcast %cst_30 : f32 to vector<4x1x32xf32>
    %80 = arith.divf %78, %79 : vector<4x1x32xf32>
    %81 = arith.mulf %76, %76 : vector<4x8x32xf32>
    %cst_31 = arith.constant dense<0.000000e+00> : vector<4x32xf32>
    %82 = vector.multi_reduction <add>, %81, %cst_31 [1] : vector<4x8x32xf32> to vector<4x32xf32>
    %83 = vector.shape_cast %82 : vector<4x32xf32> to vector<4x1x32xf32>
    %cst_32 = arith.constant 8.000000e+00 : f32
    %84 = vector.broadcast %cst_32 : f32 to vector<4x1x32xf32>
    %85 = arith.divf %83, %84 : vector<4x1x32xf32>
    %86 = arith.mulf %80, %80 : vector<4x1x32xf32>
    %87 = arith.subf %85, %86 : vector<4x1x32xf32>
    %cst_33 = arith.constant 0.000000e+00 : f32
    %88 = vector.broadcast %cst_33 : f32 to vector<4x1x32xf32>
    %89 = arith.maximumf %87, %88 : vector<4x1x32xf32>
    %cst_34 = arith.constant 9.99999974E-6 : f32
    %90 = vector.broadcast %cst_34 : f32 to vector<4x1x32xf32>
    %91 = arith.addf %89, %90 : vector<4x1x32xf32>
    %92 = math.rsqrt %91 : vector<4x1x32xf32>
    %93 = arith.mulf %80, %92 : vector<4x1x32xf32>
    %cst_35 = arith.constant 0.000000e+00 : f32
    %94 = vector.broadcast %cst_35 : f32 to vector<4x1x32xf32>
    %95 = arith.subf %94, %93 : vector<4x1x32xf32>
    %96 = vector.broadcast %92 : vector<4x1x32xf32> to vector<4x8x32xf32>
    %97 = arith.mulf %76, %96 : vector<4x8x32xf32>
    %98 = vector.broadcast %95 : vector<4x1x32xf32> to vector<4x8x32xf32>
    %99 = arith.addf %97, %98 : vector<4x8x32xf32>
    %100 = vector.extract_strided_slice %99 {offsets = [0, 0, 0], sizes = [1, 8, 32], strides = [1, 1, 1]} : vector<4x8x32xf32> to vector<1x8x32xf32>
    %101 = vector.shape_cast %100 : vector<1x8x32xf32> to vector<8x32xf32>
    %c0_36 = arith.constant 0 : index
    %c0_37 = arith.constant 0 : index
    %c0_38 = arith.constant 0 : index
    %102 = vector.load %arg6[%c0_36, %c0_37, %c0_38] : memref<1x8x128xf32, #tpu.memory_space<vmem>>, vector<1x8x32xf32>
    %103 = vector.shape_cast %102 : vector<1x8x32xf32> to vector<8x32xf32>
    %104 = vector.shape_cast %101 : vector<8x32xf32> to vector<1x8x32xf32>
    tpu.vector_store %arg6[%c0_36, %c0_37, %c0_38], %104 {strides = array<i32>} : memref<1x8x128xf32, #tpu.memory_space<vmem>>, vector<1x8x32xf32>,
    %105 = vector.extract_strided_slice %99 {offsets = [1, 0, 0], sizes = [1, 8, 32], strides = [1, 1, 1]} : vector<4x8x32xf32> to vector<1x8x32xf32>
    %106 = vector.shape_cast %105 : vector<1x8x32xf32> to vector<8x32xf32>
    %c0_39 = arith.constant 0 : index
    %c0_40 = arith.constant 0 : index
    %c32 = arith.constant 32 : index
    %107 = vector.load %arg6[%c0_39, %c0_40, %c32] : memref<1x8x128xf32, #tpu.memory_space<vmem>>, vector<1x8x32xf32>
    %108 = vector.shape_cast %107 : vector<1x8x32xf32> to vector<8x32xf32>
    %109 = vector.shape_cast %106 : vector<8x32xf32> to vector<1x8x32xf32>
    tpu.vector_store %arg6[%c0_39, %c0_40, %c32], %109 {strides = array<i32>} : memref<1x8x128xf32, #tpu.memory_space<vmem>>, vector<1x8x32xf32>,
    %110 = vector.extract_strided_slice %99 {offsets = [2, 0, 0], sizes = [1, 8, 32], strides = [1, 1, 1]} : vector<4x8x32xf32> to vector<1x8x32xf32>
    %111 = vector.shape_cast %110 : vector<1x8x32xf32> to vector<8x32xf32>
    %c0_41 = arith.constant 0 : index
    %c0_42 = arith.constant 0 : index
    %c64 = arith.constant 64 : index
    %112 = vector.load %arg6[%c0_41, %c0_42, %c64] : memref<1x8x128xf32, #tpu.memory_space<vmem>>, vector<1x8x32xf32>
    %113 = vector.shape_cast %112 : vector<1x8x32xf32> to vector<8x32xf32>
    %114 = vector.shape_cast %111 : vector<8x32xf32> to vector<1x8x32xf32>
    tpu.vector_store %arg6[%c0_41, %c0_42, %c64], %114 {strides = array<i32>} : memref<1x8x128xf32, #tpu.memory_space<vmem>>, vector<1x8x32xf32>,
    %115 = vector.extract_strided_slice %99 {offsets = [3, 0, 0], sizes = [1, 8, 32], strides = [1, 1, 1]} : vector<4x8x32xf32> to vector<1x8x32xf32>
    %116 = vector.shape_cast %115 : vector<1x8x32xf32> to vector<8x32xf32>
    %c0_43 = arith.constant 0 : index
    %c0_44 = arith.constant 0 : index
    %c96 = arith.constant 96 : index
    %117 = vector.load %arg6[%c0_43, %c0_44, %c96] : memref<1x8x128xf32, #tpu.memory_space<vmem>>, vector<1x8x32xf32>
    %118 = vector.shape_cast %117 : vector<1x8x32xf32> to vector<8x32xf32>
    %119 = vector.shape_cast %116 : vector<8x32xf32> to vector<1x8x32xf32>
    tpu.vector_store %arg6[%c0_43, %c0_44, %c96], %119 {strides = array<i32>} : memref<1x8x128xf32, #tpu.memory_space<vmem>>, vector<1x8x32xf32>,
    return
  }
  func.func @transform_0(%arg0: i32) -> (i32, i32, i32) {
    %c0_i32 = arith.constant 0 : i32
    %c0_i32_0 = arith.constant 0 : i32
    %c0_i32_1 = arith.constant 0 : i32
    return %arg0, %c0_i32, %c0_i32_0 : i32, i32, i32
  }
  func.func @transform_1(%arg0: i32) -> (i32, i32) {
    %c0_i32 = arith.constant 0 : i32
    %c0_i32_0 = arith.constant 0 : i32
    %c0_i32_1 = arith.constant 0 : i32
    return %c0_i32, %c0_i32_0 : i32, i32
  }
  func.func @transform_2(%arg0: i32) -> (i32, i32) {
    %c0_i32 = arith.constant 0 : i32
    %c0_i32_0 = arith.constant 0 : i32
    %c0_i32_1 = arith.constant 0 : i32
    return %c0_i32, %c0_i32_0 : i32, i32
  }
  func.func @transform_3(%arg0: i32) -> (i32, i32) {
    %c0_i32 = arith.constant 0 : i32
    %c0_i32_0 = arith.constant 0 : i32
    %c0_i32_1 = arith.constant 0 : i32
    return %c0_i32, %c0_i32_0 : i32, i32
  }
  func.func @transform_4(%arg0: i32) -> (i32, i32) {
    %c0_i32 = arith.constant 0 : i32
    %c0_i32_0 = arith.constant 0 : i32
    %c0_i32_1 = arith.constant 0 : i32
    return %c0_i32, %c0_i32_0 : i32, i32
  }
  func.func @transform_5(%arg0: i32) -> (i32, i32, i32) {
    %c0_i32 = arith.constant 0 : i32
    %c0_i32_0 = arith.constant 0 : i32
    %c0_i32_1 = arith.constant 0 : i32
    return %arg0, %c0_i32, %c0_i32_0 : i32, i32, i32
  }
}

module attributes {stable_mosaic.version = 11 : i64} {
  func.func @_siamese_kernel(%arg0: i32, %arg1: memref<1x32x32xbf16, #tpu.memory_space<vmem>>, %arg2: memref<32x64xbf16, #tpu.memory_space<vmem>>, %arg3: memref<64x64xbf16, #tpu.memory_space<vmem>>, %arg4: memref<64x32xbf16, #tpu.memory_space<vmem>>, %arg5: memref<4x64xf32, #tpu.memory_space<vmem>>, %arg6: memref<1x8x128xf32, #tpu.memory_space<vmem>>) attributes {dimension_semantics = [#tpu.dimension_semantics<parallel>], iteration_bounds = array<i64: 2>, scalar_prefetch = 0 : i64, scratch_operands = 0 : i64, tpu.core_type = #tpu.core_type<tc>, window_params = [{transform_indices = @transform_0, window_bounds = array<i64: 1, 32, 32>}, {pipeline_mode = #tpu.pipeline_mode<synchronous>, transform_indices = @transform_1, window_bounds = array<i64: 32, 64>}, {pipeline_mode = #tpu.pipeline_mode<synchronous>, transform_indices = @transform_2, window_bounds = array<i64: 64, 64>}, {pipeline_mode = #tpu.pipeline_mode<synchronous>, transform_indices = @transform_3, window_bounds = array<i64: 64, 32>}, {pipeline_mode = #tpu.pipeline_mode<synchronous>, transform_indices = @transform_4, window_bounds = array<i64: 4, 64>}, {transform_indices = @transform_5, window_bounds = array<i64: 1, 8, 128>}]} {
    %c0 = arith.constant 0 : index
    %c0_0 = arith.constant 0 : index
    %0 = vector.load %arg5[%c0, %c0_0] : memref<4x64xf32, #tpu.memory_space<vmem>>, vector<1x64xf32>
    %c1 = arith.constant 1 : index
    %c0_1 = arith.constant 0 : index
    %1 = vector.load %arg5[%c1, %c0_1] : memref<4x64xf32, #tpu.memory_space<vmem>>, vector<1x64xf32>
    %c2 = arith.constant 2 : index
    %c0_2 = arith.constant 0 : index
    %2 = vector.load %arg5[%c2, %c0_2] : memref<4x64xf32, #tpu.memory_space<vmem>>, vector<1x64xf32>
    %c3 = arith.constant 3 : index
    %c0_3 = arith.constant 0 : index
    %3 = vector.load %arg5[%c3, %c0_3] : memref<4x64xf32, #tpu.memory_space<vmem>>, vector<1x64xf32>
    %c0_4 = arith.constant 0 : index
    %c0_5 = arith.constant 0 : index
    %c0_6 = arith.constant 0 : index
    %4 = vector.load %arg1[%c0_4, %c0_5, %c0_6] : memref<1x32x32xbf16, #tpu.memory_space<vmem>>, vector<1x32x32xbf16>
    %5 = vector.shape_cast %4 : vector<1x32x32xbf16> to vector<32x32xbf16>
    %c0_7 = arith.constant 0 : index
    %c0_8 = arith.constant 0 : index
    %6 = vector.load %arg2[%c0_7, %c0_8] : memref<32x64xbf16, #tpu.memory_space<vmem>>, vector<32x64xbf16>
    %cst = arith.constant dense<0.000000e+00> : vector<32x64xf32>
    %7 = tpu.matmul %5, %6, %cst {dimension_numbers = #tpu.dot_dimension_numbers<[1], [0], [0], [1], [0, 0, 1, 1], [], []>} : vector<32x32xbf16>, vector<32x64xbf16>, vector<32x64xf32> -> vector<32x64xf32>
    %8 = vector.shape_cast %7 : vector<32x64xf32> to vector<4x8x64xf32>
    %cst_9 = arith.constant dense<0.000000e+00> : vector<4x64xf32>
    %9 = vector.multi_reduction <add>, %8, %cst_9 [1] : vector<4x8x64xf32> to vector<4x64xf32>
    %10 = vector.shape_cast %9 : vector<4x64xf32> to vector<4x1x64xf32>
    %cst_10 = arith.constant 8.000000e+00 : f32
    %11 = vector.broadcast %cst_10 : f32 to vector<4x1x64xf32>
    %12 = arith.divf %10, %11 : vector<4x1x64xf32>
    %13 = arith.mulf %8, %8 : vector<4x8x64xf32>
    %cst_11 = arith.constant dense<0.000000e+00> : vector<4x64xf32>
    %14 = vector.multi_reduction <add>, %13, %cst_11 [1] : vector<4x8x64xf32> to vector<4x64xf32>
    %15 = vector.shape_cast %14 : vector<4x64xf32> to vector<4x1x64xf32>
    %cst_12 = arith.constant 8.000000e+00 : f32
    %16 = vector.broadcast %cst_12 : f32 to vector<4x1x64xf32>
    %17 = arith.divf %15, %16 : vector<4x1x64xf32>
    %18 = arith.mulf %12, %12 : vector<4x1x64xf32>
    %19 = arith.subf %17, %18 : vector<4x1x64xf32>
    %cst_13 = arith.constant 0.000000e+00 : f32
    %20 = vector.broadcast %cst_13 : f32 to vector<4x1x64xf32>
    %21 = arith.maximumf %19, %20 : vector<4x1x64xf32>
    %cst_14 = arith.constant 9.99999974E-6 : f32
    %22 = vector.broadcast %cst_14 : f32 to vector<4x1x64xf32>
    %23 = arith.addf %21, %22 : vector<4x1x64xf32>
    %24 = math.rsqrt %23 : vector<4x1x64xf32>
    %25 = vector.shape_cast %0 : vector<1x64xf32> to vector<1x1x64xf32>
    %26 = vector.broadcast %25 : vector<1x1x64xf32> to vector<4x1x64xf32>
    %27 = arith.mulf %24, %26 : vector<4x1x64xf32>
    %28 = arith.mulf %12, %27 : vector<4x1x64xf32>
    %29 = vector.shape_cast %1 : vector<1x64xf32> to vector<1x1x64xf32>
    %30 = vector.broadcast %29 : vector<1x1x64xf32> to vector<4x1x64xf32>
    %31 = arith.subf %30, %28 : vector<4x1x64xf32>
    %32 = vector.broadcast %27 : vector<4x1x64xf32> to vector<4x8x64xf32>
    %33 = arith.mulf %8, %32 : vector<4x8x64xf32>
    %34 = vector.broadcast %31 : vector<4x1x64xf32> to vector<4x8x64xf32>
    %35 = arith.addf %33, %34 : vector<4x8x64xf32>
    %cst_15 = arith.constant 0.000000e+00 : f32
    %36 = vector.broadcast %cst_15 : f32 to vector<4x8x64xf32>
    %37 = arith.maximumf %35, %36 : vector<4x8x64xf32>
    %38 = arith.truncf %37 : vector<4x8x64xf32> to vector<4x8x64xbf16>
    %39 = vector.shape_cast %38 : vector<4x8x64xbf16> to vector<32x64xbf16>
    %c0_16 = arith.constant 0 : index
    %c0_17 = arith.constant 0 : index
    %40 = vector.load %arg3[%c0_16, %c0_17] : memref<64x64xbf16, #tpu.memory_space<vmem>>, vector<64x64xbf16>
    %cst_18 = arith.constant dense<0.000000e+00> : vector<32x64xf32>
    %41 = tpu.matmul %39, %40, %cst_18 {dimension_numbers = #tpu.dot_dimension_numbers<[1], [0], [0], [1], [0, 0, 1, 1], [], []>} : vector<32x64xbf16>, vector<64x64xbf16>, vector<32x64xf32> -> vector<32x64xf32>
    %42 = vector.shape_cast %41 : vector<32x64xf32> to vector<4x8x64xf32>
    %cst_19 = arith.constant dense<0.000000e+00> : vector<4x64xf32>
    %43 = vector.multi_reduction <add>, %42, %cst_19 [1] : vector<4x8x64xf32> to vector<4x64xf32>
    %44 = vector.shape_cast %43 : vector<4x64xf32> to vector<4x1x64xf32>
    %cst_20 = arith.constant 8.000000e+00 : f32
    %45 = vector.broadcast %cst_20 : f32 to vector<4x1x64xf32>
    %46 = arith.divf %44, %45 : vector<4x1x64xf32>
    %47 = arith.mulf %42, %42 : vector<4x8x64xf32>
    %cst_21 = arith.constant dense<0.000000e+00> : vector<4x64xf32>
    %48 = vector.multi_reduction <add>, %47, %cst_21 [1] : vector<4x8x64xf32> to vector<4x64xf32>
    %49 = vector.shape_cast %48 : vector<4x64xf32> to vector<4x1x64xf32>
    %cst_22 = arith.constant 8.000000e+00 : f32
    %50 = vector.broadcast %cst_22 : f32 to vector<4x1x64xf32>
    %51 = arith.divf %49, %50 : vector<4x1x64xf32>
    %52 = arith.mulf %46, %46 : vector<4x1x64xf32>
    %53 = arith.subf %51, %52 : vector<4x1x64xf32>
    %cst_23 = arith.constant 0.000000e+00 : f32
    %54 = vector.broadcast %cst_23 : f32 to vector<4x1x64xf32>
    %55 = arith.maximumf %53, %54 : vector<4x1x64xf32>
    %cst_24 = arith.constant 9.99999974E-6 : f32
    %56 = vector.broadcast %cst_24 : f32 to vector<4x1x64xf32>
    %57 = arith.addf %55, %56 : vector<4x1x64xf32>
    %58 = math.rsqrt %57 : vector<4x1x64xf32>
    %59 = vector.shape_cast %2 : vector<1x64xf32> to vector<1x1x64xf32>
    %60 = vector.broadcast %59 : vector<1x1x64xf32> to vector<4x1x64xf32>
    %61 = arith.mulf %58, %60 : vector<4x1x64xf32>
    %62 = arith.mulf %46, %61 : vector<4x1x64xf32>
    %63 = vector.shape_cast %3 : vector<1x64xf32> to vector<1x1x64xf32>
    %64 = vector.broadcast %63 : vector<1x1x64xf32> to vector<4x1x64xf32>
    %65 = arith.subf %64, %62 : vector<4x1x64xf32>
    %66 = vector.broadcast %61 : vector<4x1x64xf32> to vector<4x8x64xf32>
    %67 = arith.mulf %42, %66 : vector<4x8x64xf32>
    %68 = vector.broadcast %65 : vector<4x1x64xf32> to vector<4x8x64xf32>
    %69 = arith.addf %67, %68 : vector<4x8x64xf32>
    %cst_25 = arith.constant 0.000000e+00 : f32
    %70 = vector.broadcast %cst_25 : f32 to vector<4x8x64xf32>
    %71 = arith.maximumf %69, %70 : vector<4x8x64xf32>
    %72 = arith.truncf %71 : vector<4x8x64xf32> to vector<4x8x64xbf16>
    %73 = vector.shape_cast %72 : vector<4x8x64xbf16> to vector<32x64xbf16>
    %c0_26 = arith.constant 0 : index
    %c0_27 = arith.constant 0 : index
    %74 = vector.load %arg4[%c0_26, %c0_27] : memref<64x32xbf16, #tpu.memory_space<vmem>>, vector<64x32xbf16>
    %cst_28 = arith.constant dense<0.000000e+00> : vector<32x32xf32>
    %75 = tpu.matmul %73, %74, %cst_28 {dimension_numbers = #tpu.dot_dimension_numbers<[1], [0], [0], [1], [0, 0, 1, 1], [], []>} : vector<32x64xbf16>, vector<64x32xbf16>, vector<32x32xf32> -> vector<32x32xf32>
    %76 = vector.shape_cast %75 : vector<32x32xf32> to vector<4x8x32xf32>
    %cst_29 = arith.constant dense<0.000000e+00> : vector<4x32xf32>
    %77 = vector.multi_reduction <add>, %76, %cst_29 [1] : vector<4x8x32xf32> to vector<4x32xf32>
    %78 = vector.shape_cast %77 : vector<4x32xf32> to vector<4x1x32xf32>
    %cst_30 = arith.constant 8.000000e+00 : f32
    %79 = vector.broadcast %cst_30 : f32 to vector<4x1x32xf32>
    %80 = arith.divf %78, %79 : vector<4x1x32xf32>
    %81 = arith.mulf %76, %76 : vector<4x8x32xf32>
    %cst_31 = arith.constant dense<0.000000e+00> : vector<4x32xf32>
    %82 = vector.multi_reduction <add>, %81, %cst_31 [1] : vector<4x8x32xf32> to vector<4x32xf32>
    %83 = vector.shape_cast %82 : vector<4x32xf32> to vector<4x1x32xf32>
    %cst_32 = arith.constant 8.000000e+00 : f32
    %84 = vector.broadcast %cst_32 : f32 to vector<4x1x32xf32>
    %85 = arith.divf %83, %84 : vector<4x1x32xf32>
    %86 = arith.mulf %80, %80 : vector<4x1x32xf32>
    %87 = arith.subf %85, %86 : vector<4x1x32xf32>
    %cst_33 = arith.constant 0.000000e+00 : f32
    %88 = vector.broadcast %cst_33 : f32 to vector<4x1x32xf32>
    %89 = arith.maximumf %87, %88 : vector<4x1x32xf32>
    %cst_34 = arith.constant 9.99999974E-6 : f32
    %90 = vector.broadcast %cst_34 : f32 to vector<4x1x32xf32>
    %91 = arith.addf %89, %90 : vector<4x1x32xf32>
    %92 = math.rsqrt %91 : vector<4x1x32xf32>
    %93 = arith.mulf %80, %92 : vector<4x1x32xf32>
    %cst_35 = arith.constant 0.000000e+00 : f32
    %94 = vector.broadcast %cst_35 : f32 to vector<4x1x32xf32>
    %95 = arith.subf %94, %93 : vector<4x1x32xf32>
    %96 = vector.broadcast %92 : vector<4x1x32xf32> to vector<4x8x32xf32>
    %97 = arith.mulf %76, %96 : vector<4x8x32xf32>
    %98 = vector.broadcast %95 : vector<4x1x32xf32> to vector<4x8x32xf32>
    %99 = arith.addf %97, %98 : vector<4x8x32xf32>
    %100 = vector.extract_strided_slice %99 {offsets = [0, 0, 0], sizes = [1, 8, 32], strides = [1, 1, 1]} : vector<4x8x32xf32> to vector<1x8x32xf32>
    %101 = vector.shape_cast %100 : vector<1x8x32xf32> to vector<8x32xf32>
    %c0_36 = arith.constant 0 : index
    %c0_37 = arith.constant 0 : index
    %c0_38 = arith.constant 0 : index
    %102 = vector.load %arg6[%c0_36, %c0_37, %c0_38] : memref<1x8x128xf32, #tpu.memory_space<vmem>>, vector<1x8x32xf32>
    %103 = vector.shape_cast %102 : vector<1x8x32xf32> to vector<8x32xf32>
    %104 = vector.shape_cast %101 : vector<8x32xf32> to vector<1x8x32xf32>
    tpu.vector_store %arg6[%c0_36, %c0_37, %c0_38], %104 {strides = array<i32>} : memref<1x8x128xf32, #tpu.memory_space<vmem>>, vector<1x8x32xf32>,
    %105 = vector.extract_strided_slice %99 {offsets = [1, 0, 0], sizes = [1, 8, 32], strides = [1, 1, 1]} : vector<4x8x32xf32> to vector<1x8x32xf32>
    %106 = vector.shape_cast %105 : vector<1x8x32xf32> to vector<8x32xf32>
    %c0_39 = arith.constant 0 : index
    %c0_40 = arith.constant 0 : index
    %c32 = arith.constant 32 : index
    %107 = vector.load %arg6[%c0_39, %c0_40, %c32] : memref<1x8x128xf32, #tpu.memory_space<vmem>>, vector<1x8x32xf32>
    %108 = vector.shape_cast %107 : vector<1x8x32xf32> to vector<8x32xf32>
    %109 = vector.shape_cast %106 : vector<8x32xf32> to vector<1x8x32xf32>
    tpu.vector_store %arg6[%c0_39, %c0_40, %c32], %109 {strides = array<i32>} : memref<1x8x128xf32, #tpu.memory_space<vmem>>, vector<1x8x32xf32>,
    %110 = vector.extract_strided_slice %99 {offsets = [2, 0, 0], sizes = [1, 8, 32], strides = [1, 1, 1]} : vector<4x8x32xf32> to vector<1x8x32xf32>
    %111 = vector.shape_cast %110 : vector<1x8x32xf32> to vector<8x32xf32>
    %c0_41 = arith.constant 0 : index
    %c0_42 = arith.constant 0 : index
    %c64 = arith.constant 64 : index
    %112 = vector.load %arg6[%c0_41, %c0_42, %c64] : memref<1x8x128xf32, #tpu.memory_space<vmem>>, vector<1x8x32xf32>
    %113 = vector.shape_cast %112 : vector<1x8x32xf32> to vector<8x32xf32>
    %114 = vector.shape_cast %111 : vector<8x32xf32> to vector<1x8x32xf32>
    tpu.vector_store %arg6[%c0_41, %c0_42, %c64], %114 {strides = array<i32>} : memref<1x8x128xf32, #tpu.memory_space<vmem>>, vector<1x8x32xf32>,
    %115 = vector.extract_strided_slice %99 {offsets = [3, 0, 0], sizes = [1, 8, 32], strides = [1, 1, 1]} : vector<4x8x32xf32> to vector<1x8x32xf32>
    %116 = vector.shape_cast %115 : vector<1x8x32xf32> to vector<8x32xf32>
    %c0_43 = arith.constant 0 : index
    %c0_44 = arith.constant 0 : index
    %c96 = arith.constant 96 : index
    %117 = vector.load %arg6[%c0_43, %c0_44, %c96] : memref<1x8x128xf32, #tpu.memory_space<vmem>>, vector<1x8x32xf32>
    %118 = vector.shape_cast %117 : vector<1x8x32xf32> to vector<8x32xf32>
    %119 = vector.shape_cast %116 : vector<8x32xf32> to vector<1x8x32xf32>
    tpu.vector_store %arg6[%c0_43, %c0_44, %c96], %119 {strides = array<i32>} : memref<1x8x128xf32, #tpu.memory_space<vmem>>, vector<1x8x32xf32>,
    return
  }
  func.func @transform_0(%arg0: i32) -> (i32, i32, i32) {
    %c0_i32 = arith.constant 0 : i32
    %c0_i32_0 = arith.constant 0 : i32
    %c0_i32_1 = arith.constant 0 : i32
    return %arg0, %c0_i32, %c0_i32_0 : i32, i32, i32
  }
  func.func @transform_1(%arg0: i32) -> (i32, i32) {
    %c0_i32 = arith.constant 0 : i32
    %c0_i32_0 = arith.constant 0 : i32
    %c0_i32_1 = arith.constant 0 : i32
    return %c0_i32, %c0_i32_0 : i32, i32
  }
  func.func @transform_2(%arg0: i32) -> (i32, i32) {
    %c0_i32 = arith.constant 0 : i32
    %c0_i32_0 = arith.constant 0 : i32
    %c0_i32_1 = arith.constant 0 : i32
    return %c0_i32, %c0_i32_0 : i32, i32
  }
  func.func @transform_3(%arg0: i32) -> (i32, i32) {
    %c0_i32 = arith.constant 0 : i32
    %c0_i32_0 = arith.constant 0 : i32
    %c0_i32_1 = arith.constant 0 : i32
    return %c0_i32, %c0_i32_0 : i32, i32
  }
  func.func @transform_4(%arg0: i32) -> (i32, i32) {
    %c0_i32 = arith.constant 0 : i32
    %c0_i32_0 = arith.constant 0 : i32
    %c0_i32_1 = arith.constant 0 : i32
    return %c0_i32, %c0_i32_0 : i32, i32
  }
  func.func @transform_5(%arg0: i32) -> (i32, i32, i32) {
    %c0_i32 = arith.constant 0 : i32
    %c0_i32_0 = arith.constant 0 : i32
    %c0_i32_1 = arith.constant 0 : i32
    return %arg0, %c0_i32, %c0_i32_0 : i32, i32, i32
  }
}

</mosaic_0001>

<llo_original>
// kernel: tpu_custom_call.1
$region0: #{tpu_custom_call.1}
  #allocation0 [shape = 'u32[]', space=smem, size = 0x4, offset = 0x4, fixed_abs, tag = 'smem constant byte address 0x4 - core index']
  #allocation1 [shape = 'u32[144,128]{1,0:T(1,128)}', space=vmem, size = 0x12000, scoped, tag = 'internal scratch']
  %s0 = inlined_call_operand.vmem [shape: bf16[2,32,32], index: 0, kind: input, shape index: {}]
  %s1 = inlined_call_operand.vmem [shape: bf16[32,64], index: 1, kind: input, shape index: {}]
  %s2 = inlined_call_operand.hbm [shape: bf16[64,64], index: 2, kind: input, shape index: {}]
  %s3 = inlined_call_operand.vmem [shape: bf16[64,32], index: 3, kind: input, shape index: {}]
  %s4 = inlined_call_operand.vmem [shape: f32[4,64], index: 4, kind: input, shape index: {}]
  %s5 = inlined_call_operand.hbm [shape: f32[2,8,128], index: 5, kind: output, shape index: {}]
  %s6 = sld [smem:[#allocation0]]
  $region57: #{tpu_custom_call.1} parent=0
    _
  %s8 = ssub.s32 1, %s6
  %s9 = scalar_select 0, %s8, %s6
  $region1: #{tpu_custom_call.1} parent=0
    #allocation2 [shape = 'u8[16384]{0}', space=vmem, size = 0x4000, scoped, tag = 'input window, operand 2, single buffered']
    #allocation3 [shape = 's32[2]{0}', space=sflag, size = 0x8, scoped, tag = 'scoped memory for tpu_custom_call.1']
    #allocation4 [shape = 's32[2]{0}', space=sflag, size = 0x8, scoped, tag = 'scoped memory for tpu_custom_call.1']
    #allocation5 [shape = 'u8[8192]{0}', space=vmem, size = 0x2000, scoped, tag = 'output window, operand 0']
    %10 = vsyncpa [#allocation3], 0
    %11 = vsyncpa [#allocation4], 0
    %s12 = scalar_lea.sflag [#allocation4], 1
    %13 = vsyncpa %s12, 0
    loop: start=0, step=1, limit=4
    $region2: #{tpu_custom_call.1} parent=1 // loop_pre_header
      _
    $region3: #{tpu_custom_call.1} parent=1 // loop_header
      %s15 = sphi 0, %s19
      %p16 = scmp.ge.s32.totalorder %s15, 4
      %s25 = sphi 0, %s27
      %s28 = sphi 0, %s25
      %s29 = sphi 0, %s28
      %s45 = sphi 0, %s29
      %s49 = sphi 0, %s49
      %s51 = sphi 0, %s49
      %s52 = sphi 0, %s51
      %s66 = sphi 0, %s52
      %s70 = sphi 0, %s70
      %s72 = sphi 0, %s70
      %s73 = sphi 0, %s72
      %s87 = sphi 0, %s73
      %s91 = sphi 0, %s91
      %s93 = sphi 0, %s91
      %s94 = sphi 0, %s93
      %s108 = sphi 0, %s94
      %s112 = sphi 0, %s112
      %s114 = sphi 0, %s112
      %s115 = sphi 0, %s114
      %s129 = sphi 0, %s115
      %s135 = sphi 0, %s137
      %s138 = sphi 0, %s135
      %s139 = sphi 0, %s138
      %s155 = sphi 0, %s139
    $region4: #{tpu_custom_call.1} parent=1 // loop_header_branch
      %18 = sbr.rel (%p16) target = $region8
    $region5: #{tpu_custom_call.1} parent=1 // loop_body
      %s20 = ssub.s32 %s15, 1
      %s21 = ssub.s32 %s15, 2
      %s22 = sadd.s32 %s15, 1
      %s23 = ssub.s32 %s15, %s22
      %p24 = scmp.eq.s32.totalorder %s23, 0
      %s26 = sadd.s32 %s25, 1
      %s27 = scalar_select %p24, %s25, %s26
      %p30 = pneg %p24
      %p31 = scmp.eq.s32.totalorder %s15, 1
      %p32 = por %p30, %p31
      %p33 = scmp.ne.s32.totalorder %s25, %s28
      %p34 = scmp.eq.s32.totalorder %s15, 0
      %p35 = por %p33, %p34
      %p36 = scmp.ne.s32.totalorder %s25, %s28
      %p37 = scmp.eq.s32.totalorder %s20, 1
      %p38 = por %p36, %p37
      %p39 = scmp.ne.s32.totalorder %s28, %s29
      %p40 = scmp.eq.s32.totalorder %s20, 0
      %p41 = por %p39, %p40
      %p42 = scmp.ne.s32.totalorder %s28, %s29
      %p43 = scmp.eq.s32.totalorder %s21, 1
      %p44 = por %p42, %p43
      %p46 = scmp.ne.s32.totalorder %s29, %s45
      %p47 = scmp.eq.s32.totalorder %s21, 0
      %p48 = por %p46, %p47
      %s50 = sadd.s32 %s49, 1
      %p53 = scmp.eq.s32.totalorder %s15, 1
      %p54 = scmp.ne.s32.totalorder %s49, %s51
      %p55 = scmp.eq.s32.totalorder %s15, 0
      %p56 = por %p54, %p55
      %p57 = scmp.ne.s32.totalorder %s49, %s51
      %p58 = scmp.eq.s32.totalorder %s20, 1
      %p59 = por %p57, %p58
      %p60 = scmp.ne.s32.totalorder %s51, %s52
      %p61 = scmp.eq.s32.totalorder %s20, 0
      %p62 = por %p60, %p61
      %p63 = scmp.ne.s32.totalorder %s51, %s52
      %p64 = scmp.eq.s32.totalorder %s21, 1
      %p65 = por %p63, %p64
      %p67 = scmp.ne.s32.totalorder %s52, %s66
      %p68 = scmp.eq.s32.totalorder %s21, 0
      %p69 = por %p67, %p68
      %s71 = sadd.s32 %s70, 1
      %p74 = scmp.eq.s32.totalorder %s15, 1
      %p75 = scmp.ne.s32.totalorder %s70, %s72
      %p76 = scmp.eq.s32.totalorder %s15, 0
      %p77 = por %p75, %p76
      %p78 = scmp.ne.s32.totalorder %s70, %s72
      %p79 = scmp.eq.s32.totalorder %s20, 1
      %p80 = por %p78, %p79
      %p81 = scmp.ne.s32.totalorder %s72, %s73
      %p82 = scmp.eq.s32.totalorder %s20, 0
      %p83 = por %p81, %p82
      %p84 = scmp.ne.s32.totalorder %s72, %s73
      %p85 = scmp.eq.s32.totalorder %s21, 1
      %p86 = por %p84, %p85
      %p88 = scmp.ne.s32.totalorder %s73, %s87
      %p89 = scmp.eq.s32.totalorder %s21, 0
      %p90 = por %p88, %p89
      %s92 = sadd.s32 %s91, 1
      %p95 = scmp.eq.s32.totalorder %s15, 1
      %p96 = scmp.ne.s32.totalorder %s91, %s93
      %p97 = scmp.eq.s32.totalorder %s15, 0
      %p98 = por %p96, %p97
      %p99 = scmp.ne.s32.totalorder %s91, %s93
      %p100 = scmp.eq.s32.totalorder %s20, 1
      %p101 = por %p99, %p100
      %p102 = scmp.ne.s32.totalorder %s93, %s94
      %p103 = scmp.eq.s32.totalorder %s20, 0
      %p104 = por %p102, %p103
      %p105 = scmp.ne.s32.totalorder %s93, %s94
      %p106 = scmp.eq.s32.totalorder %s21, 1
      %p107 = por %p105, %p106
      %p109 = scmp.ne.s32.totalorder %s94, %s108
      %p110 = scmp.eq.s32.totalorder %s21, 0
      %p111 = por %p109, %p110
      %s113 = sadd.s32 %s112, 1
      %p116 = scmp.eq.s32.totalorder %s15, 1
      %p117 = scmp.ne.s32.totalorder %s112, %s114
      %p118 = scmp.eq.s32.totalorder %s15, 0
      %p119 = por %p117, %p118
      %p120 = scmp.ne.s32.totalorder %s112, %s114
      %p121 = scmp.eq.s32.totalorder %s20, 1
      %p122 = por %p120, %p121
      %p123 = scmp.ne.s32.totalorder %s114, %s115
      %p124 = scmp.eq.s32.totalorder %s20, 0
      %p125 = por %p123, %p124
      %p126 = scmp.ne.s32.totalorder %s114, %s115
      %p127 = scmp.eq.s32.totalorder %s21, 1
      %p128 = por %p126, %p127
      %p130 = scmp.ne.s32.totalorder %s115, %s129
      %p131 = scmp.eq.s32.totalorder %s21, 0
      %p132 = por %p130, %p131
      %s133 = ssub.s32 %s15, %s22
      %p134 = scmp.eq.s32.totalorder %s133, 0
      %s136 = sadd.s32 %s135, 1
      %s137 = scalar_select %p134, %s135, %s136
      %p140 = pneg %p134
      %p141 = scmp.eq.s32.totalorder %s15, 1
      %p142 = por %p140, %p141
      %p143 = scmp.ne.s32.totalorder %s135, %s138
      %p144 = scmp.eq.s32.totalorder %s15, 0
      %p145 = por %p143, %p144
      %p146 = scmp.ne.s32.totalorder %s135, %s138
      %p147 = scmp.eq.s32.totalorder %s20, 1
      %p148 = por %p146, %p147
      %p149 = scmp.ne.s32.totalorder %s138, %s139
      %p150 = scmp.eq.s32.totalorder %s20, 0
      %p151 = por %p149, %p150
      %p152 = scmp.ne.s32.totalorder %s138, %s139
      %p153 = scmp.eq.s32.totalorder %s21, 1
      %p154 = por %p152, %p153
      %p156 = scmp.ne.s32.totalorder %s139, %s155
      %p157 = scmp.eq.s32.totalorder %s21, 0
      %p158 = por %p156, %p157
      %p159 = scmp.le.s32.totalorder 1, %s15
      %p160 = scmp.lt.s32.totalorder %s15, 3
      %p161 = pnand %p159, %p160
      %p162 = pneg %p161
      // Predicated region
      $region9: #{tpu_custom_call.1} parent=5 // pred_check
        _
      $region10: #{tpu_custom_call.1} parent=5 // pred_check_branch
        %164 = sbr.rel (%p161) target = $region12
      $region11: #{tpu_custom_call.1} parent=5 // pred_region
        %s165 = ssub.s32 %s15, 1
        // Predicated region
        $region13: #{tpu_custom_call.1} parent=11 // pred_check
          %p166 = pneg %p62
        $region14: #{tpu_custom_call.1} parent=11 // pred_check_branch
          %168 = sbr.rel (%p166) target = $region16
        $region15: #{tpu_custom_call.1} parent=11 // pred_region
          _
        $region16: #{tpu_custom_call.1} parent=11 // pred_fallthru
          _
        // Predicated region
        $region17: #{tpu_custom_call.1} parent=11 // pred_check
          %p169 = pneg %p83
        $region18: #{tpu_custom_call.1} parent=11 // pred_check_branch
          %171 = sbr.rel (%p169) target = $region20
        $region19: #{tpu_custom_call.1} parent=11 // pred_region
          %s173 = ssub.s32 512, 512
          %174 = vsyncadd [#allocation3], %s173
          %s175 = sshll.u32 [#allocation2], 4
          %s176 = int_to_ptr.vmem [resolvable:$true] %s175
          %181 = dma.hbm_to_vmem [thread:$0]  %s2, 512, %s176, [#allocation3], 64, 64, 4
        $region20: #{tpu_custom_call.1} parent=11 // pred_fallthru
          _
        // Predicated region
        $region21: #{tpu_custom_call.1} parent=11 // pred_check
          %p182 = pneg %p104
        $region22: #{tpu_custom_call.1} parent=11 // pred_check_branch
          %184 = sbr.rel (%p182) target = $region24
        $region23: #{tpu_custom_call.1} parent=11 // pred_region
          _
        $region24: #{tpu_custom_call.1} parent=11 // pred_fallthru
          _
        // Predicated region
        $region25: #{tpu_custom_call.1} parent=11 // pred_check
          %p185 = pneg %p125
        $region26: #{tpu_custom_call.1} parent=11 // pred_check_branch
          %187 = sbr.rel (%p185) target = $region28
        $region27: #{tpu_custom_call.1} parent=11 // pred_region
          _
        $region28: #{tpu_custom_call.1} parent=11 // pred_fallthru
          _
      $region12: #{tpu_custom_call.1} parent=5 // pred_fallthru
        _
      %p188 = scmp.lt.s32.totalorder %s15, 2
      // Predicated region
      $region29: #{tpu_custom_call.1} parent=5 // pred_check
        %p189 = pneg %p188
      $region30: #{tpu_custom_call.1} parent=5 // pred_check_branch
        %191 = sbr.rel (%p189) target = $region32
      $region31: #{tpu_custom_call.1} parent=5 // pred_region
        // Predicated region
        $region33: #{tpu_custom_call.1} parent=31 // pred_check
          %p192 = pneg %p35
        $region34: #{tpu_custom_call.1} parent=31 // pred_check_branch
          %194 = sbr.rel (%p192) target = $region36
        $region35: #{tpu_custom_call.1} parent=31 // pred_region
          %p195 = scmp.lt.s32.totalorder %s15, 1
          %s196 = scalar_select %p195, %s15, 1
          %s197 = smul.addr %s196, 4
          %s198 = smul.addr %s197, 4
          %s199 = scalar_lea.vmem %s0, %s198
        $region36: #{tpu_custom_call.1} parent=31 // pred_fallthru
          _
      $region32: #{tpu_custom_call.1} parent=5 // pred_fallthru
        _
      %p200 = scmp.le.s32.totalorder 1, %s15
      %p201 = scmp.lt.s32.totalorder %s15, 3
      %p202 = pnand %p200, %p201
      %p203 = pneg %p202
      // Predicated region
      $region37: #{tpu_custom_call.1} parent=5 // pred_check
        _
      $region38: #{tpu_custom_call.1} parent=5 // pred_check_branch
        %205 = sbr.rel (%p202) target = $region40
      $region39: #{tpu_custom_call.1} parent=5 // pred_region
        %s206 = ssub.s32 %s15, 1
        // Predicated region
        $region41: #{tpu_custom_call.1} parent=39 // pred_check
          %p207 = pneg %p83
        $region42: #{tpu_custom_call.1} parent=39 // pred_check_branch
          %209 = sbr.rel (%p207) target = $region44
        $region43: #{tpu_custom_call.1} parent=39 // pred_region
          %210 = dma.done [#allocation3], 512
        $region44: #{tpu_custom_call.1} parent=39 // pred_fallthru
          _
        %p211 = scmp.lt.s32.totalorder %s20, 1
        %s212 = scalar_select %p211, %s20, 1
        %s213 = smul.addr %s212, 4
        %s214 = smul.addr %s213, 4
        %s215 = scalar_lea.vmem %s0, %s214
        %p216 = pneg %p41
        %p217 = pneg %p38
        %p218 = pneg %p62
        %p219 = pneg %p59
        %p220 = pneg %p83
        %p221 = pneg %p80
        %p222 = pneg %p104
        %p223 = pneg %p101
        %p224 = pneg %p125
        %p225 = pneg %p122
        %p226 = pneg %p151
        %p227 = pneg %p148
        %s228 = sand.u32 %s138, 1
        %s229 = scalar_lea.sflag [#allocation4], %s228
        %s230 = sand.u32 %s138, 1
        %s231 = smul.addr %s230, 8
        %s232 = scalar_lea.vmem [#allocation5], %s231
        %p233 = scmp.lt.s32.totalorder %s20, 1
        %s234 = scalar_select %p233, %s20, 1
        %s235 = smul.addr %s234, 4
        %s236 = smul.addr %s235, 4
        %s237 = scalar_lea.vmem %s0, %s236
        %v239 = vld [vmem:[%s4] sm:$0x1]
        %v240 = vld [vmem:[%s4 + $0x1] sm:$0x1]
        %v241 = vld [vmem:[%s4 + $0x2] sm:$0x1]
        %v242 = vld [vmem:[%s4 + $0x3] sm:$0x1]
        %v243 = vld [vmem:[%s237] sm:$0xf]
        %v244 = vld [vmem:[%s237 + $0x4] sm:$0xf]
        %v245 = vld [vmem:[%s237 + $0x8] sm:$0xf]
        %v246 = vld [vmem:[%s237 + $0xc] sm:$0xf]
        %v247 = vld [vmem:[%s1] sm:$0xf]
        %v248 = vld [vmem:[%s1 + $0x4] sm:$0xf]
        %v249 = vld [vmem:[%s1 + $0x8] sm:$0xf]
        %v250 = vld [vmem:[%s1 + $0xc] sm:$0xf]
        %v255 = vunpack.c.l.b16 %v243
        %v256 = vunpack.c.l.b16 %v244
        %v257 = vunpack.c.l.b16 %v245
        %v258 = vunpack.c.l.b16 %v246
        %v259 = vpack.c.b16 %v256, %v255
        %v260 = vpack.c.b16 %v258, %v257
        %v265 = vunpack.c.l.b16 %v247
        %v266 = vunpack.c.l.b16 %v248
        %v267 = vunpack.c.l.b16 %v249
        %v268 = vunpack.c.l.b16 %v250
        %v269 = vpack.c.b16 %v266, %v265
        %v270 = vpack.c.b16 %v268, %v267
        %vm273 = vcmask 261120
        %v275 = vsel %vm273, %v259, 0
        %v278 = vsel %vm273, %v260, 0
        %280 = vmatprep.subr.bf16.mxu0 0
        %281 = vmatpush1.bf16.msra.mxu0 %v269
        %282 = vmatprep.subr.bf16.mxu0 0
        %283 = vmatpush1.bf16.msra.mxu0 %v270
        %284 = vmatprep.subr.bf16.mxu0 0
        %285 = vmatpush1.bf16.msra.mxu0 0
        %286 = vmatprep.subr.bf16.mxu0 0
        %287 = vmatpush1.bf16.msra.mxu0 0
        %288 = vmatprep.subr.bf16.mxu0 0
        %289 = vmatpush1.bf16.msra.mxu0 0
        %290 = vmatprep.subr.bf16.mxu0 0
        %291 = vmatpush1.bf16.msra.mxu0 0
        %292 = vmatprep.subr.bf16.mxu0 0
        %293 = vmatpush1.bf16.msra.mxu0 0
        %294 = vmatprep.subr.bf16.mxu0 0
        %295 = vmatpush1.bf16.msra.mxu0 0
        %296 = vmatprep.subr.bf16.mxu0 0
        %297 = vmatpush1.bf16.msra.mxu0 0
        %298 = vmatprep.subr.bf16.mxu0 0
        %299 = vmatpush1.bf16.msra.mxu0 0
        %300 = vmatprep.subr.bf16.mxu0 0
        %301 = vmatpush1.bf16.msra.mxu0 0
        %302 = vmatprep.subr.bf16.mxu0 0
        %303 = vmatpush1.bf16.msra.mxu0 0
        %304 = vmatprep.subr.bf16.mxu0 0
        %305 = vmatpush1.bf16.msra.mxu0 0
        %306 = vmatprep.subr.bf16.mxu0 0
        %307 = vmatpush1.bf16.msra.mxu0 0
        %308 = vmatprep.subr.bf16.mxu0 0
        %309 = vmatpush1.bf16.msra.mxu0 0
        %310 = vmatprep.subr.bf16.mxu0 0
        %311 = vmatpush1.bf16.msra.mxu0 0
        %312 = vmatprep.mubr.bf16.mxu0 0
        %313 = vmatmul.mubr.bf16.gmra.mrb[0].mxu0 %v275
        %v314 = vpop.f32.mrb[0].mxu0
        %v315 = vadd.f32 0.0, %v314
        %v316 = vpop.f32.mrb[0].mxu0
        %v317 = vpop.f32.mrb[0].mxu0
        %v318 = vadd.f32 0.0, %v317
        %v319 = vpop.f32.mrb[0].mxu0
        %320 = vmatprep.mubr.bf16.mxu0 0
        %321 = vmatmul.mubr.bf16.gmra.mrb[0].mxu0 %v278
        %v322 = vpop.f32.mrb[0].mxu0
        %v323 = vadd.f32 0.0, %v322
        %v324 = vpop.f32.mrb[0].mxu0
        %v325 = vpop.f32.mrb[0].mxu0
        %v326 = vadd.f32 0.0, %v325
        %v327 = vpop.f32.mrb[0].mxu0
        %328 = vdwg.mxu0
        %vm329 = vcmask 523264
        %v330 = vsel %vm329, %v315, 0.0
        %v331 = vrot.slane %v330, 4
        %v332 = vadd.f32 %v330, %v331
        %v333 = vrot.slane %v332, 2
        %v334 = vadd.f32 %v332, %v333
        %v335 = vrot.slane %v334, 1
        %v336 = vadd.f32 %v334, %v335
        %v337 = vsel %vm329, %v318, 0.0
        %v338 = vrot.slane %v337, 4
        %v339 = vadd.f32 %v337, %v338
        %v340 = vrot.slane %v339, 2
        %v341 = vadd.f32 %v339, %v340
        %v342 = vrot.slane %v341, 1
        %v343 = vadd.f32 %v341, %v342
        %v344 = vsel %vm329, %v323, 0.0
        %v345 = vrot.slane %v344, 4
        %v346 = vadd.f32 %v344, %v345
        %v347 = vrot.slane %v346, 2
        %v348 = vadd.f32 %v346, %v347
        %v349 = vrot.slane %v348, 1
        %v350 = vadd.f32 %v348, %v349
        %v351 = vsel %vm329, %v326, 0.0
        %v352 = vrot.slane %v351, 4
        %v353 = vadd.f32 %v351, %v352
        %v354 = vrot.slane %v353, 2
        %v355 = vadd.f32 %v353, %v354
        %v356 = vrot.slane %v355, 1
        %v357 = vadd.f32 %v355, %v356
        %v358 = vrcp.pop 8.0
        %v359 = vmul.f32 %v336, %v358
        %v360 = vmul.f32 %v343, %v358
        %v361 = vmul.f32 %v350, %v358
        %v362 = vmul.f32 %v357, %v358
        %v363 = vmul.f32 %v315, %v315
        %v364 = vmul.f32 %v318, %v318
        %v365 = vmul.f32 %v323, %v323
        %v366 = vmul.f32 %v326, %v326
        %v367 = vsel %vm329, %v363, 0.0
        %v368 = vrot.slane %v367, 4
        %v369 = vadd.f32 %v367, %v368
        %v370 = vrot.slane %v369, 2
        %v371 = vadd.f32 %v369, %v370
        %v372 = vrot.slane %v371, 1
        %v373 = vadd.f32 %v371, %v372
        %v374 = vsel %vm329, %v364, 0.0
        %v375 = vrot.slane %v374, 4
        %v376 = vadd.f32 %v374, %v375
        %v377 = vrot.slane %v376, 2
        %v378 = vadd.f32 %v376, %v377
        %v379 = vrot.slane %v378, 1
        %v380 = vadd.f32 %v378, %v379
        %v381 = vsel %vm329, %v365, 0.0
        %v382 = vrot.slane %v381, 4
        %v383 = vadd.f32 %v381, %v382
        %v384 = vrot.slane %v383, 2
        %v385 = vadd.f32 %v383, %v384
        %v386 = vrot.slane %v385, 1
        %v387 = vadd.f32 %v385, %v386
        %v388 = vsel %vm329, %v366, 0.0
        %v389 = vrot.slane %v388, 4
        %v390 = vadd.f32 %v388, %v389
        %v391 = vrot.slane %v390, 2
        %v392 = vadd.f32 %v390, %v391
        %v393 = vrot.slane %v392, 1
        %v394 = vadd.f32 %v392, %v393
        %v395 = vmul.f32 %v373, %v358
        %v396 = vmul.f32 %v380, %v358
        %v397 = vmul.f32 %v387, %v358
        %v398 = vmul.f32 %v394, %v358
        %v399 = vmul.f32 %v359, %v359
        %v400 = vmul.f32 %v360, %v360
        %v401 = vmul.f32 %v361, %v361
        %v402 = vmul.f32 %v362, %v362
        %v403 = vsub.f32 %v395, %v399
        %v404 = vsub.f32 %v396, %v400
        %v405 = vsub.f32 %v397, %v401
        %v406 = vsub.f32 %v398, %v402
        %v407 = vmax.f32 %v403, 0.0
        %v408 = vmax.f32 %v404, 0.0
        %v409 = vmax.f32 %v405, 0.0
        %v410 = vmax.f32 %v406, 0.0
        %v411 = vadd.f32 %v407, 1e-05
        %v412 = vadd.f32 %v408, 1e-05
        %v413 = vadd.f32 %v409, 1e-05
        %v414 = vadd.f32 %v410, 1e-05
        %v415 = vrsqrt.pop %v411
        %v416 = vrsqrt.pop %v412
        %v417 = vrsqrt.pop %v413
        %v418 = vrsqrt.pop %v414
        %v419 = vmul.f32 %v415, %v239
        %v420 = vmul.f32 %v416, %v239
        %v421 = vmul.f32 %v417, %v239
        %v422 = vmul.f32 %v418, %v239
        %v423 = vmul.f32 %v359, %v419
        %v424 = vmul.f32 %v360, %v420
        %v425 = vmul.f32 %v361, %v421
        %v426 = vmul.f32 %v362, %v422
        %v427 = vsub.f32 %v240, %v423
        %v428 = vsub.f32 %v240, %v424
        %v429 = vsub.f32 %v240, %v425
        %v430 = vsub.f32 %v240, %v426
        %v431 = vlaneseq
        %v432 = vshrl.u32 %v431, 7
        %v433 = vsub.s32 0, %v432
        %v434 = vrot.slane %v419, %v433
        %v435 = vlaneseq
        %v436 = vshrl.u32 %v435, 7
        %v437 = vsub.s32 0, %v436
        %v438 = vrot.slane %v420, %v437
        %v439 = vlaneseq
        %v440 = vshrl.u32 %v439, 7
        %v441 = vsub.s32 0, %v440
        %v442 = vrot.slane %v421, %v441
        %v443 = vlaneseq
        %v444 = vshrl.u32 %v443, 7
        %v445 = vsub.s32 0, %v444
        %v446 = vrot.slane %v422, %v445
        %v447 = vmul.f32 %v315, %v434
        %v448 = vmul.f32 %v318, %v438
        %v449 = vmul.f32 %v323, %v442
        %v450 = vmul.f32 %v326, %v446
        %v451 = vlaneseq
        %v452 = vshrl.u32 %v451, 7
        %v453 = vsub.s32 0, %v452
        %v454 = vrot.slane %v427, %v453
        %v455 = vlaneseq
        %v456 = vshrl.u32 %v455, 7
        %v457 = vsub.s32 0, %v456
        %v458 = vrot.slane %v428, %v457
        %v459 = vlaneseq
        %v460 = vshrl.u32 %v459, 7
        %v461 = vsub.s32 0, %v460
        %v462 = vrot.slane %v429, %v461
        %v463 = vlaneseq
        %v464 = vshrl.u32 %v463, 7
        %v465 = vsub.s32 0, %v464
        %v466 = vrot.slane %v430, %v465
        %v467 = vadd.f32 %v447, %v454
        %v468 = vadd.f32 %v448, %v458
        %v469 = vadd.f32 %v449, %v462
        %v470 = vadd.f32 %v450, %v466
        %v471 = vmax.f32 %v467, 0.0
        %v472 = vmax.f32 %v468, 0.0
        %v473 = vmax.f32 %v469, 0.0
        %v474 = vmax.f32 %v470, 0.0
        %v475 = vpack.c.bf16 %v471, %v471
        %v476 = vpack.c.bf16 %v472, %v472
        %v477 = vpack.c.bf16 %v473, %v473
        %v478 = vpack.c.bf16 %v474, %v474
        %v479 = vld [vmem:[#allocation2] sm:$0xf]
        %v480 = vld [vmem:[#allocation2 + $0x4] sm:$0xf]
        %v481 = vld [vmem:[#allocation2 + $0x8] sm:$0xf]
        %v482 = vld [vmem:[#allocation2 + $0xc] sm:$0xf]
        %v483 = vld [vmem:[#allocation2 + $0x10] sm:$0xf]
        %v484 = vld [vmem:[#allocation2 + $0x14] sm:$0xf]
        %v485 = vld [vmem:[#allocation2 + $0x18] sm:$0xf]
        %v486 = vld [vmem:[#allocation2 + $0x1c] sm:$0xf]
        %v491 = vunpack.c.l.b16 %v475
        %v492 = vunpack.c.l.b16 %v476
        %v493 = vunpack.c.l.b16 %v477
        %v494 = vunpack.c.l.b16 %v478
        %v495 = vpack.c.b16 %v492, %v491
        %v496 = vpack.c.b16 %v494, %v493
        %v505 = vunpack.c.l.b16 %v479
        %v506 = vunpack.c.l.b16 %v480
        %v507 = vunpack.c.l.b16 %v481
        %v508 = vunpack.c.l.b16 %v482
        %v509 = vunpack.c.l.b16 %v483
        %v510 = vunpack.c.l.b16 %v484
        %v511 = vunpack.c.l.b16 %v485
        %v512 = vunpack.c.l.b16 %v486
        %v513 = vpack.c.b16 %v506, %v505
        %v514 = vpack.c.b16 %v508, %v507
        %v515 = vpack.c.b16 %v510, %v509
        %v516 = vpack.c.b16 %v512, %v511
        %v522 = vsel %vm329, %v495, 0
        %v525 = vsel %vm329, %v496, 0
        %527 = vmatprep.subr.bf16.mxu0 0
        %528 = vmatpush1.bf16.msra.mxu0 %v513
        %529 = vmatprep.subr.bf16.mxu0 0
        %530 = vmatpush1.bf16.msra.mxu0 %v514
        %531 = vmatprep.subr.bf16.mxu0 0
        %532 = vmatpush1.bf16.msra.mxu0 %v515
        %533 = vmatprep.subr.bf16.mxu0 0
        %534 = vmatpush1.bf16.msra.mxu0 %v516
        %535 = vmatprep.subr.bf16.mxu0 0
        %536 = vmatpush1.bf16.msra.mxu0 0
        %537 = vmatprep.subr.bf16.mxu0 0
        %538 = vmatpush1.bf16.msra.mxu0 0
        %539 = vmatprep.subr.bf16.mxu0 0
        %540 = vmatpush1.bf16.msra.mxu0 0
        %541 = vmatprep.subr.bf16.mxu0 0
        %542 = vmatpush1.bf16.msra.mxu0 0
        %543 = vmatprep.subr.bf16.mxu0 0
        %544 = vmatpush1.bf16.msra.mxu0 0
        %545 = vmatprep.subr.bf16.mxu0 0
        %546 = vmatpush1.bf16.msra.mxu0 0
        %547 = vmatprep.subr.bf16.mxu0 0
        %548 = vmatpush1.bf16.msra.mxu0 0
        %549 = vmatprep.subr.bf16.mxu0 0
        %550 = vmatpush1.bf16.msra.mxu0 0
        %551 = vmatprep.subr.bf16.mxu0 0
        %552 = vmatpush1.bf16.msra.mxu0 0
        %553 = vmatprep.subr.bf16.mxu0 0
        %554 = vmatpush1.bf16.msra.mxu0 0
        %555 = vmatprep.subr.bf16.mxu0 0
        %556 = vmatpush1.bf16.msra.mxu0 0
        %557 = vmatprep.subr.bf16.mxu0 0
        %558 = vmatpush1.bf16.msra.mxu0 0
        %559 = vmatprep.mubr.bf16.mxu0 0
        %560 = vmatmul.mubr.bf16.gmra.mrb[0].mxu0 %v522
        %v561 = vpop.f32.mrb[0].mxu0
        %v562 = vadd.f32 0.0, %v561
        %v563 = vpop.f32.mrb[0].mxu0
        %v564 = vpop.f32.mrb[0].mxu0
        %v565 = vadd.f32 0.0, %v564
        %v566 = vpop.f32.mrb[0].mxu0
        %567 = vmatprep.mubr.bf16.mxu0 0
        %568 = vmatmul.mubr.bf16.gmra.mrb[0].mxu0 %v525
        %v569 = vpop.f32.mrb[0].mxu0
        %v570 = vadd.f32 0.0, %v569
        %v571 = vpop.f32.mrb[0].mxu0
        %v572 = vpop.f32.mrb[0].mxu0
        %v573 = vadd.f32 0.0, %v572
        %v574 = vpop.f32.mrb[0].mxu0
        %575 = vdwg.mxu0
        %v576 = vsel %vm329, %v562, 0.0
        %v577 = vrot.slane %v576, 4
        %v578 = vadd.f32 %v576, %v577
        %v579 = vrot.slane %v578, 2
        %v580 = vadd.f32 %v578, %v579
        %v581 = vrot.slane %v580, 1
        %v582 = vadd.f32 %v580, %v581
        %v583 = vsel %vm329, %v565, 0.0
        %v584 = vrot.slane %v583, 4
        %v585 = vadd.f32 %v583, %v584
        %v586 = vrot.slane %v585, 2
        %v587 = vadd.f32 %v585, %v586
        %v588 = vrot.slane %v587, 1
        %v589 = vadd.f32 %v587, %v588
        %v590 = vsel %vm329, %v570, 0.0
        %v591 = vrot.slane %v590, 4
        %v592 = vadd.f32 %v590, %v591
        %v593 = vrot.slane %v592, 2
        %v594 = vadd.f32 %v592, %v593
        %v595 = vrot.slane %v594, 1
        %v596 = vadd.f32 %v594, %v595
        %v597 = vsel %vm329, %v573, 0.0
        %v598 = vrot.slane %v597, 4
        %v599 = vadd.f32 %v597, %v598
        %v600 = vrot.slane %v599, 2
        %v601 = vadd.f32 %v599, %v600
        %v602 = vrot.slane %v601, 1
        %v603 = vadd.f32 %v601, %v602
        %v604 = vmul.f32 %v582, %v358
        %v605 = vmul.f32 %v589, %v358
        %v606 = vmul.f32 %v596, %v358
        %v607 = vmul.f32 %v603, %v358
        %v608 = vmul.f32 %v562, %v562
        %v609 = vmul.f32 %v565, %v565
        %v610 = vmul.f32 %v570, %v570
        %v611 = vmul.f32 %v573, %v573
        %v612 = vsel %vm329, %v608, 0.0
        %v613 = vrot.slane %v612, 4
        %v614 = vadd.f32 %v612, %v613
        %v615 = vrot.slane %v614, 2
        %v616 = vadd.f32 %v614, %v615
        %v617 = vrot.slane %v616, 1
        %v618 = vadd.f32 %v616, %v617
        %v619 = vsel %vm329, %v609, 0.0
        %v620 = vrot.slane %v619, 4
        %v621 = vadd.f32 %v619, %v620
        %v622 = vrot.slane %v621, 2
        %v623 = vadd.f32 %v621, %v622
        %v624 = vrot.slane %v623, 1
        %v625 = vadd.f32 %v623, %v624
        %v626 = vsel %vm329, %v610, 0.0
        %v627 = vrot.slane %v626, 4
        %v628 = vadd.f32 %v626, %v627
        %v629 = vrot.slane %v628, 2
        %v630 = vadd.f32 %v628, %v629
        %v631 = vrot.slane %v630, 1
        %v632 = vadd.f32 %v630, %v631
        %v633 = vsel %vm329, %v611, 0.0
        %v634 = vrot.slane %v633, 4
        %v635 = vadd.f32 %v633, %v634
        %v636 = vrot.slane %v635, 2
        %v637 = vadd.f32 %v635, %v636
        %v638 = vrot.slane %v637, 1
        %v639 = vadd.f32 %v637, %v638
        %v640 = vmul.f32 %v618, %v358
        %v641 = vmul.f32 %v625, %v358
        %v642 = vmul.f32 %v632, %v358
        %v643 = vmul.f32 %v639, %v358
        %v644 = vmul.f32 %v604, %v604
        %v645 = vmul.f32 %v605, %v605
        %v646 = vmul.f32 %v606, %v606
        %v647 = vmul.f32 %v607, %v607
        %v648 = vsub.f32 %v640, %v644
        %v649 = vsub.f32 %v641, %v645
        %v650 = vsub.f32 %v642, %v646
        %v651 = vsub.f32 %v643, %v647
        %v652 = vmax.f32 %v648, 0.0
        %v653 = vmax.f32 %v649, 0.0
        %v654 = vmax.f32 %v650, 0.0
        %v655 = vmax.f32 %v651, 0.0
        %v656 = vadd.f32 %v652, 1e-05
        %v657 = vadd.f32 %v653, 1e-05
        %v658 = vadd.f32 %v654, 1e-05
        %v659 = vadd.f32 %v655, 1e-05
        %v660 = vrsqrt.pop %v656
        %v661 = vrsqrt.pop %v657
        %v662 = vrsqrt.pop %v658
        %v663 = vrsqrt.pop %v659
        %v664 = vmul.f32 %v660, %v241
        %v665 = vmul.f32 %v661, %v241
        %v666 = vmul.f32 %v662, %v241
        %v667 = vmul.f32 %v663, %v241
        %v668 = vmul.f32 %v604, %v664
        %v669 = vmul.f32 %v605, %v665
        %v670 = vmul.f32 %v606, %v666
        %v671 = vmul.f32 %v607, %v667
        %v672 = vsub.f32 %v242, %v668
        %v673 = vsub.f32 %v242, %v669
        %v674 = vsub.f32 %v242, %v670
        %v675 = vsub.f32 %v242, %v671
        %v676 = vlaneseq
        %v677 = vshrl.u32 %v676, 7
        %v678 = vsub.s32 0, %v677
        %v679 = vrot.slane %v664, %v678
        %v680 = vlaneseq
        %v681 = vshrl.u32 %v680, 7
        %v682 = vsub.s32 0, %v681
        %v683 = vrot.slane %v665, %v682
        %v684 = vlaneseq
        %v685 = vshrl.u32 %v684, 7
        %v686 = vsub.s32 0, %v685
        %v687 = vrot.slane %v666, %v686
        %v688 = vlaneseq
        %v689 = vshrl.u32 %v688, 7
        %v690 = vsub.s32 0, %v689
        %v691 = vrot.slane %v667, %v690
        %v692 = vmul.f32 %v562, %v679
        %v693 = vmul.f32 %v565, %v683
        %v694 = vmul.f32 %v570, %v687
        %v695 = vmul.f32 %v573, %v691
        %v696 = vlaneseq
        %v697 = vshrl.u32 %v696, 7
        %v698 = vsub.s32 0, %v697
        %v699 = vrot.slane %v672, %v698
        %v700 = vlaneseq
        %v701 = vshrl.u32 %v700, 7
        %v702 = vsub.s32 0, %v701
        %v703 = vrot.slane %v673, %v702
        %v704 = vlaneseq
        %v705 = vshrl.u32 %v704, 7
        %v706 = vsub.s32 0, %v705
        %v707 = vrot.slane %v674, %v706
        %v708 = vlaneseq
        %v709 = vshrl.u32 %v708, 7
        %v710 = vsub.s32 0, %v709
        %v711 = vrot.slane %v675, %v710
        %v712 = vadd.f32 %v692, %v699
        %v713 = vadd.f32 %v693, %v703
        %v714 = vadd.f32 %v694, %v707
        %v715 = vadd.f32 %v695, %v711
        %v716 = vmax.f32 %v712, 0.0
        %v717 = vmax.f32 %v713, 0.0
        %v718 = vmax.f32 %v714, 0.0
        %v719 = vmax.f32 %v715, 0.0
        %v720 = vpack.c.bf16 %v716, %v716
        %v721 = vpack.c.bf16 %v717, %v717
        %v722 = vpack.c.bf16 %v718, %v718
        %v723 = vpack.c.bf16 %v719, %v719
        %v724 = vld [vmem:[%s3] sm:$0xf]
        %v725 = vld [vmem:[%s3 + $0x4] sm:$0xf]
        %v726 = vld [vmem:[%s3 + $0x8] sm:$0xf]
        %v727 = vld [vmem:[%s3 + $0xc] sm:$0xf]
        %v728 = vld [vmem:[%s3 + $0x10] sm:$0xf]
        %v729 = vld [vmem:[%s3 + $0x14] sm:$0xf]
        %v730 = vld [vmem:[%s3 + $0x18] sm:$0xf]
        %v731 = vld [vmem:[%s3 + $0x1c] sm:$0xf]
        %v736 = vunpack.c.l.b16 %v720
        %v737 = vunpack.c.l.b16 %v721
        %v738 = vunpack.c.l.b16 %v722
        %v739 = vunpack.c.l.b16 %v723
        %v740 = vpack.c.b16 %v737, %v736
        %v741 = vpack.c.b16 %v739, %v738
        %v750 = vunpack.c.l.b16 %v724
        %v751 = vunpack.c.l.b16 %v725
        %v752 = vunpack.c.l.b16 %v726
        %v753 = vunpack.c.l.b16 %v727
        %v754 = vunpack.c.l.b16 %v728
        %v755 = vunpack.c.l.b16 %v729
        %v756 = vunpack.c.l.b16 %v730
        %v757 = vunpack.c.l.b16 %v731
        %v758 = vpack.c.b16 %v751, %v750
        %v759 = vpack.c.b16 %v753, %v752
        %v760 = vpack.c.b16 %v755, %v754
        %v761 = vpack.c.b16 %v757, %v756
        %v767 = vsel %vm329, %v740, 0
        %v770 = vsel %vm329, %v741, 0
        %772 = vmatprep.subr.bf16.mxu0 0
        %773 = vmatpush1.bf16.msra.mxu0 %v758
        %774 = vmatprep.subr.bf16.mxu0 0
        %775 = vmatpush1.bf16.msra.mxu0 %v759
        %776 = vmatprep.subr.bf16.mxu0 0
        %777 = vmatpush1.bf16.msra.mxu0 %v760
        %778 = vmatprep.subr.bf16.mxu0 0
        %779 = vmatpush1.bf16.msra.mxu0 %v761
        %780 = vmatprep.subr.bf16.mxu0 0
        %781 = vmatpush1.bf16.msra.mxu0 0
        %782 = vmatprep.subr.bf16.mxu0 0
        %783 = vmatpush1.bf16.msra.mxu0 0
        %784 = vmatprep.subr.bf16.mxu0 0
        %785 = vmatpush1.bf16.msra.mxu0 0
        %786 = vmatprep.subr.bf16.mxu0 0
        %787 = vmatpush1.bf16.msra.mxu0 0
        %788 = vmatprep.subr.bf16.mxu0 0
        %789 = vmatpush1.bf16.msra.mxu0 0
        %790 = vmatprep.subr.bf16.mxu0 0
        %791 = vmatpush1.bf16.msra.mxu0 0
        %792 = vmatprep.subr.bf16.mxu0 0
        %793 = vmatpush1.bf16.msra.mxu0 0
        %794 = vmatprep.subr.bf16.mxu0 0
        %795 = vmatpush1.bf16.msra.mxu0 0
        %796 = vmatprep.subr.bf16.mxu0 0
        %797 = vmatpush1.bf16.msra.mxu0 0
        %798 = vmatprep.subr.bf16.mxu0 0
        %799 = vmatpush1.bf16.msra.mxu0 0
        %800 = vmatprep.subr.bf16.mxu0 0
        %801 = vmatpush1.bf16.msra.mxu0 0
        %802 = vmatprep.subr.bf16.mxu0 0
        %803 = vmatpush1.bf16.msra.mxu0 0
        %804 = vmatprep.mubr.bf16.mxu0 0
        %805 = vmatmul.mubr.bf16.gmra.mrb[0].mxu0 %v767
        %v806 = vpop.f32.mrb[0].mxu0
        %v807 = vadd.f32 0.0, %v806
        %v808 = vpop.f32.mrb[0].mxu0
        %v809 = vpop.f32.mrb[0].mxu0
        %v810 = vadd.f32 0.0, %v809
        %v811 = vpop.f32.mrb[0].mxu0
        %812 = vmatprep.mubr.bf16.mxu0 0
        %813 = vmatmul.mubr.bf16.gmra.mrb[0].mxu0 %v770
        %v814 = vpop.f32.mrb[0].mxu0
        %v815 = vadd.f32 0.0, %v814
        %v816 = vpop.f32.mrb[0].mxu0
        %v817 = vpop.f32.mrb[0].mxu0
        %v818 = vadd.f32 0.0, %v817
        %v819 = vpop.f32.mrb[0].mxu0
        %820 = vdwg.mxu0
        %v821 = vsel %vm273, %v807, 0.0
        %v822 = vrot.slane %v821, 4
        %v823 = vadd.f32 %v821, %v822
        %v824 = vrot.slane %v823, 2
        %v825 = vadd.f32 %v823, %v824
        %v826 = vrot.slane %v825, 1
        %v827 = vadd.f32 %v825, %v826
        %v828 = vsel %vm273, %v810, 0.0
        %v829 = vrot.slane %v828, 4
        %v830 = vadd.f32 %v828, %v829
        %v831 = vrot.slane %v830, 2
        %v832 = vadd.f32 %v830, %v831
        %v833 = vrot.slane %v832, 1
        %v834 = vadd.f32 %v832, %v833
        %v835 = vsel %vm273, %v815, 0.0
        %v836 = vrot.slane %v835, 4
        %v837 = vadd.f32 %v835, %v836
        %v838 = vrot.slane %v837, 2
        %v839 = vadd.f32 %v837, %v838
        %v840 = vrot.slane %v839, 1
        %v841 = vadd.f32 %v839, %v840
        %v842 = vsel %vm273, %v818, 0.0
        %v843 = vrot.slane %v842, 4
        %v844 = vadd.f32 %v842, %v843
        %v845 = vrot.slane %v844, 2
        %v846 = vadd.f32 %v844, %v845
        %v847 = vrot.slane %v846, 1
        %v848 = vadd.f32 %v846, %v847
        %v849 = vmul.f32 %v827, %v358
        %v850 = vmul.f32 %v834, %v358
        %v851 = vmul.f32 %v841, %v358
        %v852 = vmul.f32 %v848, %v358
        %v853 = vmul.f32 %v807, %v807
        %v854 = vmul.f32 %v810, %v810
        %v855 = vmul.f32 %v815, %v815
        %v856 = vmul.f32 %v818, %v818
        %v857 = vsel %vm273, %v853, 0.0
        %v858 = vrot.slane %v857, 4
        %v859 = vadd.f32 %v857, %v858
        %v860 = vrot.slane %v859, 2
        %v861 = vadd.f32 %v859, %v860
        %v862 = vrot.slane %v861, 1
        %v863 = vadd.f32 %v861, %v862
        %v864 = vsel %vm273, %v854, 0.0
        %v865 = vrot.slane %v864, 4
        %v866 = vadd.f32 %v864, %v865
        %v867 = vrot.slane %v866, 2
        %v868 = vadd.f32 %v866, %v867
        %v869 = vrot.slane %v868, 1
        %v870 = vadd.f32 %v868, %v869
        %v871 = vsel %vm273, %v855, 0.0
        %v872 = vrot.slane %v871, 4
        %v873 = vadd.f32 %v871, %v872
        %v874 = vrot.slane %v873, 2
        %v875 = vadd.f32 %v873, %v874
        %v876 = vrot.slane %v875, 1
        %v877 = vadd.f32 %v875, %v876
        %v878 = vsel %vm273, %v856, 0.0
        %v879 = vrot.slane %v878, 4
        %v880 = vadd.f32 %v878, %v879
        %v881 = vrot.slane %v880, 2
        %v882 = vadd.f32 %v880, %v881
        %v883 = vrot.slane %v882, 1
        %v884 = vadd.f32 %v882, %v883
        %v885 = vmul.f32 %v863, %v358
        %v886 = vmul.f32 %v870, %v358
        %v887 = vmul.f32 %v877, %v358
        %v888 = vmul.f32 %v884, %v358
        %v889 = vmul.f32 %v849, %v849
        %v890 = vmul.f32 %v850, %v850
        %v891 = vmul.f32 %v851, %v851
        %v892 = vmul.f32 %v852, %v852
        %v893 = vsub.f32 %v885, %v889
        %v894 = vsub.f32 %v886, %v890
        %v895 = vsub.f32 %v887, %v891
        %v896 = vsub.f32 %v888, %v892
        %v897 = vmax.f32 %v893, 0.0
        %v898 = vmax.f32 %v894, 0.0
        %v899 = vmax.f32 %v895, 0.0
        %v900 = vmax.f32 %v896, 0.0
        %v901 = vadd.f32 %v897, 1e-05
        %v902 = vadd.f32 %v898, 1e-05
        %v903 = vadd.f32 %v899, 1e-05
        %v904 = vadd.f32 %v900, 1e-05
        %v905 = vrsqrt.pop %v901
        %v906 = vrsqrt.pop %v902
        %v907 = vrsqrt.pop %v903
        %v908 = vrsqrt.pop %v904
        %v909 = vmul.f32 %v849, %v905
        %v910 = vmul.f32 %v850, %v906
        %v911 = vmul.f32 %v851, %v907
        %v912 = vmul.f32 %v852, %v908
        %v913 = vsub.f32 0.0, %v909
        %v914 = vsub.f32 0.0, %v910
        %v915 = vsub.f32 0.0, %v911
        %v916 = vsub.f32 0.0, %v912
        %v917 = vmul.f32 %v807, %v905
        %v918 = vmul.f32 %v810, %v906
        %v919 = vmul.f32 %v815, %v907
        %v920 = vmul.f32 %v818, %v908
        %v921 = vadd.f32 %v917, %v913
        %v922 = vadd.f32 %v918, %v914
        %v923 = vadd.f32 %v919, %v915
        %v924 = vadd.f32 %v920, %v916
        %925 = vst.msk [vmem:[%s232] sm:$0xff] %vm273, %v921
        %927 = vrot.lane.b32.xlu0 %v922, 32
        %v928 = vpop.permute.xlu0 %927
        %vm930 = vcmask 523520
        %931 = vst.msk [vmem:[%s232] sm:$0xff] %vm930, %v928
        %933 = vrot.lane.b32.xlu0 %v923, 64
        %v934 = vpop.permute.xlu0 %933
        %vm936 = vcmask 785920
        %937 = vst.msk [vmem:[%s232] sm:$0xff] %vm936, %v934
        %939 = vrot.lane.b32.xlu0 %v924, 96
        %v940 = vpop.permute.xlu0 %939
        %vm942 = vcmask 1048320
        %943 = vst.msk [vmem:[%s232] sm:$0xff] %vm942, %v940
        %s944 = sand.u32 %s138, 1
        %s945 = scalar_lea.sflag [#allocation4], %s944
        %s946 = sand.u32 %s138, 1
        %s947 = smul.addr %s946, 8
        %s948 = scalar_lea.vmem [#allocation5], %s947
        // Predicated region
        $region45: #{tpu_custom_call.1} parent=39 // pred_check
          %p949 = pneg %p148
        $region46: #{tpu_custom_call.1} parent=39 // pred_check_branch
          %951 = sbr.rel (%p949) target = $region48
        $region47: #{tpu_custom_call.1} parent=39 // pred_region
          %s953 = ssub.s32 128, 128
          %954 = vsyncadd %s945, %s953
          %s955 = smul.addr %s20, 128
          %s956 = scalar_lea.hbm %s5, %s955
          %s958 = sshll.u32 %s948, 4
          %s959 = int_to_ptr.vmem [resolvable:$true] %s958
          %961 = dma.vmem_to_hbm [thread:$0]  %s959, 128, %s956, %s945
        $region48: #{tpu_custom_call.1} parent=39 // pred_fallthru
          _
      $region40: #{tpu_custom_call.1} parent=5 // pred_fallthru
        _
      %p962 = scmp.le.s32.totalorder 2, %s15
      // Predicated region
      $region49: #{tpu_custom_call.1} parent=5 // pred_check
        %p963 = pneg %p962
      $region50: #{tpu_custom_call.1} parent=5 // pred_check_branch
        %965 = sbr.rel (%p963) target = $region52
      $region51: #{tpu_custom_call.1} parent=5 // pred_region
        %s966 = ssub.s32 %s15, 2
        // Predicated region
        $region53: #{tpu_custom_call.1} parent=51 // pred_check
          %p967 = pneg %p154
        $region54: #{tpu_custom_call.1} parent=51 // pred_check_branch
          %969 = sbr.rel (%p967) target = $region56
        $region55: #{tpu_custom_call.1} parent=51 // pred_region
          %s970 = sand.u32 %s139, 1
          %s971 = scalar_lea.sflag [#allocation4], %s970
          %s972 = sand.u32 %s139, 1
          %s973 = smul.addr %s972, 8
          %s974 = scalar_lea.vmem [#allocation5], %s973
          %975 = dma.done %s971, 128
        $region56: #{tpu_custom_call.1} parent=51 // pred_fallthru
          _
      $region52: #{tpu_custom_call.1} parent=5 // pred_fallthru
        _
    $region6: #{tpu_custom_call.1} parent=1 // loop_footer
      %s19 = sadd.s32 1, %s15
    $region7: #{tpu_custom_call.1} parent=1 // loop_footer_branch
      %14 = sbr.rel target = $region3
    $region8: #{tpu_custom_call.1} parent=1 // loop_exit
      _
    %976 = vsyncpa [#allocation3], 1
    %s977 = scalar_lea.sflag [#allocation3], 1
    %978 = vsyncpa %s977, 1
    %979 = vsyncpa [#allocation4], 1
    %s980 = scalar_lea.sflag [#allocation4], 1
    %981 = vsyncpa %s980, 1

// kernel: tpu_custom_call.1
$region0: #{tpu_custom_call.1}
  #allocation0 [shape = 'u32[]', space=smem, size = 0x4, offset = 0x4, fixed_abs, tag = 'smem constant byte address 0x4 - core index']
  #allocation1 [shape = 'u32[144,128]{1,0:T(1,128)}', space=vmem, size = 0x12000, scoped, tag = 'internal scratch']
  %s0 = inlined_call_operand.vmem [shape: bf16[2,32,32], index: 0, kind: input, shape index: {}]
  %s1 = inlined_call_operand.vmem [shape: bf16[32,64], index: 1, kind: input, shape index: {}]
  %s2 = inlined_call_operand.hbm [shape: bf16[64,64], index: 2, kind: input, shape index: {}]
  %s3 = inlined_call_operand.vmem [shape: bf16[64,32], index: 3, kind: input, shape index: {}]
  %s4 = inlined_call_operand.vmem [shape: f32[4,64], index: 4, kind: input, shape index: {}]
  %s5 = inlined_call_operand.hbm [shape: f32[2,8,128], index: 5, kind: output, shape index: {}]
  %s6 = sld [smem:[#allocation0]]
  $region57: #{tpu_custom_call.1} parent=0
    _
  %s8 = ssub.s32 1, %s6
  %s9 = scalar_select 0, %s8, %s6
  $region1: #{tpu_custom_call.1} parent=0
    #allocation2 [shape = 'u8[16384]{0}', space=vmem, size = 0x4000, scoped, tag = 'input window, operand 2, single buffered']
    #allocation3 [shape = 's32[2]{0}', space=sflag, size = 0x8, scoped, tag = 'scoped memory for tpu_custom_call.1']
    #allocation4 [shape = 's32[2]{0}', space=sflag, size = 0x8, scoped, tag = 'scoped memory for tpu_custom_call.1']
    #allocation5 [shape = 'u8[8192]{0}', space=vmem, size = 0x2000, scoped, tag = 'output window, operand 0']
    %10 = vsyncpa [#allocation3], 0
    %11 = vsyncpa [#allocation4], 0
    %s12 = scalar_lea.sflag [#allocation4], 1
    %13 = vsyncpa %s12, 0
    loop: start=0, step=1, limit=4
    $region2: #{tpu_custom_call.1} parent=1 // loop_pre_header
      _
    $region3: #{tpu_custom_call.1} parent=1 // loop_header
      %s15 = sphi 0, %s19
      %p16 = scmp.ge.s32.totalorder %s15, 4
      %s25 = sphi 0, %s27
      %s28 = sphi 0, %s25
      %s29 = sphi 0, %s28
      %s45 = sphi 0, %s29
      %s49 = sphi 0, %s49
      %s51 = sphi 0, %s49
      %s52 = sphi 0, %s51
      %s66 = sphi 0, %s52
      %s70 = sphi 0, %s70
      %s72 = sphi 0, %s70
      %s73 = sphi 0, %s72
      %s87 = sphi 0, %s73
      %s91 = sphi 0, %s91
      %s93 = sphi 0, %s91
      %s94 = sphi 0, %s93
      %s108 = sphi 0, %s94
      %s112 = sphi 0, %s112
      %s114 = sphi 0, %s112
      %s115 = sphi 0, %s114
      %s129 = sphi 0, %s115
      %s135 = sphi 0, %s137
      %s138 = sphi 0, %s135
      %s139 = sphi 0, %s138
      %s155 = sphi 0, %s139
    $region4: #{tpu_custom_call.1} parent=1 // loop_header_branch
      %18 = sbr.rel (%p16) target = $region8
    $region5: #{tpu_custom_call.1} parent=1 // loop_body
      %s20 = ssub.s32 %s15, 1
      %s21 = ssub.s32 %s15, 2
      %s22 = sadd.s32 %s15, 1
      %s23 = ssub.s32 %s15, %s22
      %p24 = scmp.eq.s32.totalorder %s23, 0
      %s26 = sadd.s32 %s25, 1
      %s27 = scalar_select %p24, %s25, %s26
      %p30 = pneg %p24
      %p31 = scmp.eq.s32.totalorder %s15, 1
      %p32 = por %p30, %p31
      %p33 = scmp.ne.s32.totalorder %s25, %s28
      %p34 = scmp.eq.s32.totalorder %s15, 0
      %p35 = por %p33, %p34
      %p36 = scmp.ne.s32.totalorder %s25, %s28
      %p37 = scmp.eq.s32.totalorder %s20, 1
      %p38 = por %p36, %p37
      %p39 = scmp.ne.s32.totalorder %s28, %s29
      %p40 = scmp.eq.s32.totalorder %s20, 0
      %p41 = por %p39, %p40
      %p42 = scmp.ne.s32.totalorder %s28, %s29
      %p43 = scmp.eq.s32.totalorder %s21, 1
      %p44 = por %p42, %p43
      %p46 = scmp.ne.s32.totalorder %s29, %s45
      %p47 = scmp.eq.s32.totalorder %s21, 0
      %p48 = por %p46, %p47
      %s50 = sadd.s32 %s49, 1
      %p53 = scmp.eq.s32.totalorder %s15, 1
      %p54 = scmp.ne.s32.totalorder %s49, %s51
      %p55 = scmp.eq.s32.totalorder %s15, 0
      %p56 = por %p54, %p55
      %p57 = scmp.ne.s32.totalorder %s49, %s51
      %p58 = scmp.eq.s32.totalorder %s20, 1
      %p59 = por %p57, %p58
      %p60 = scmp.ne.s32.totalorder %s51, %s52
      %p61 = scmp.eq.s32.totalorder %s20, 0
      %p62 = por %p60, %p61
      %p63 = scmp.ne.s32.totalorder %s51, %s52
      %p64 = scmp.eq.s32.totalorder %s21, 1
      %p65 = por %p63, %p64
      %p67 = scmp.ne.s32.totalorder %s52, %s66
      %p68 = scmp.eq.s32.totalorder %s21, 0
      %p69 = por %p67, %p68
      %s71 = sadd.s32 %s70, 1
      %p74 = scmp.eq.s32.totalorder %s15, 1
      %p75 = scmp.ne.s32.totalorder %s70, %s72
      %p76 = scmp.eq.s32.totalorder %s15, 0
      %p77 = por %p75, %p76
      %p78 = scmp.ne.s32.totalorder %s70, %s72
      %p79 = scmp.eq.s32.totalorder %s20, 1
      %p80 = por %p78, %p79
      %p81 = scmp.ne.s32.totalorder %s72, %s73
      %p82 = scmp.eq.s32.totalorder %s20, 0
      %p83 = por %p81, %p82
      %p84 = scmp.ne.s32.totalorder %s72, %s73
      %p85 = scmp.eq.s32.totalorder %s21, 1
      %p86 = por %p84, %p85
      %p88 = scmp.ne.s32.totalorder %s73, %s87
      %p89 = scmp.eq.s32.totalorder %s21, 0
      %p90 = por %p88, %p89
      %s92 = sadd.s32 %s91, 1
      %p95 = scmp.eq.s32.totalorder %s15, 1
      %p96 = scmp.ne.s32.totalorder %s91, %s93
      %p97 = scmp.eq.s32.totalorder %s15, 0
      %p98 = por %p96, %p97
      %p99 = scmp.ne.s32.totalorder %s91, %s93
      %p100 = scmp.eq.s32.totalorder %s20, 1
      %p101 = por %p99, %p100
      %p102 = scmp.ne.s32.totalorder %s93, %s94
      %p103 = scmp.eq.s32.totalorder %s20, 0
      %p104 = por %p102, %p103
      %p105 = scmp.ne.s32.totalorder %s93, %s94
      %p106 = scmp.eq.s32.totalorder %s21, 1
      %p107 = por %p105, %p106
      %p109 = scmp.ne.s32.totalorder %s94, %s108
      %p110 = scmp.eq.s32.totalorder %s21, 0
      %p111 = por %p109, %p110
      %s113 = sadd.s32 %s112, 1
      %p116 = scmp.eq.s32.totalorder %s15, 1
      %p117 = scmp.ne.s32.totalorder %s112, %s114
      %p118 = scmp.eq.s32.totalorder %s15, 0
      %p119 = por %p117, %p118
      %p120 = scmp.ne.s32.totalorder %s112, %s114
      %p121 = scmp.eq.s32.totalorder %s20, 1
      %p122 = por %p120, %p121
      %p123 = scmp.ne.s32.totalorder %s114, %s115
      %p124 = scmp.eq.s32.totalorder %s20, 0
      %p125 = por %p123, %p124
      %p126 = scmp.ne.s32.totalorder %s114, %s115
      %p127 = scmp.eq.s32.totalorder %s21, 1
      %p128 = por %p126, %p127
      %p130 = scmp.ne.s32.totalorder %s115, %s129
      %p131 = scmp.eq.s32.totalorder %s21, 0
      %p132 = por %p130, %p131
      %s133 = ssub.s32 %s15, %s22
      %p134 = scmp.eq.s32.totalorder %s133, 0
      %s136 = sadd.s32 %s135, 1
      %s137 = scalar_select %p134, %s135, %s136
      %p140 = pneg %p134
      %p141 = scmp.eq.s32.totalorder %s15, 1
      %p142 = por %p140, %p141
      %p143 = scmp.ne.s32.totalorder %s135, %s138
      %p144 = scmp.eq.s32.totalorder %s15, 0
      %p145 = por %p143, %p144
      %p146 = scmp.ne.s32.totalorder %s135, %s138
      %p147 = scmp.eq.s32.totalorder %s20, 1
      %p148 = por %p146, %p147
      %p149 = scmp.ne.s32.totalorder %s138, %s139
      %p150 = scmp.eq.s32.totalorder %s20, 0
      %p151 = por %p149, %p150
      %p152 = scmp.ne.s32.totalorder %s138, %s139
      %p153 = scmp.eq.s32.totalorder %s21, 1
      %p154 = por %p152, %p153
      %p156 = scmp.ne.s32.totalorder %s139, %s155
      %p157 = scmp.eq.s32.totalorder %s21, 0
      %p158 = por %p156, %p157
      %p159 = scmp.le.s32.totalorder 1, %s15
      %p160 = scmp.lt.s32.totalorder %s15, 3
      %p161 = pnand %p159, %p160
      %p162 = pneg %p161
      // Predicated region
      $region9: #{tpu_custom_call.1} parent=5 // pred_check
        _
      $region10: #{tpu_custom_call.1} parent=5 // pred_check_branch
        %164 = sbr.rel (%p161) target = $region12
      $region11: #{tpu_custom_call.1} parent=5 // pred_region
        %s165 = ssub.s32 %s15, 1
        // Predicated region
        $region13: #{tpu_custom_call.1} parent=11 // pred_check
          %p166 = pneg %p62
        $region14: #{tpu_custom_call.1} parent=11 // pred_check_branch
          %168 = sbr.rel (%p166) target = $region16
        $region15: #{tpu_custom_call.1} parent=11 // pred_region
          _
        $region16: #{tpu_custom_call.1} parent=11 // pred_fallthru
          _
        // Predicated region
        $region17: #{tpu_custom_call.1} parent=11 // pred_check
          %p169 = pneg %p83
        $region18: #{tpu_custom_call.1} parent=11 // pred_check_branch
          %171 = sbr.rel (%p169) target = $region20
        $region19: #{tpu_custom_call.1} parent=11 // pred_region
          %s173 = ssub.s32 512, 512
          %174 = vsyncadd [#allocation3], %s173
          %s175 = sshll.u32 [#allocation2], 4
          %s176 = int_to_ptr.vmem [resolvable:$true] %s175
          %181 = dma.hbm_to_vmem [thread:$0]  %s2, 512, %s176, [#allocation3], 64, 64, 4
        $region20: #{tpu_custom_call.1} parent=11 // pred_fallthru
          _
        // Predicated region
        $region21: #{tpu_custom_call.1} parent=11 // pred_check
          %p182 = pneg %p104
        $region22: #{tpu_custom_call.1} parent=11 // pred_check_branch
          %184 = sbr.rel (%p182) target = $region24
        $region23: #{tpu_custom_call.1} parent=11 // pred_region
          _
        $region24: #{tpu_custom_call.1} parent=11 // pred_fallthru
          _
        // Predicated region
        $region25: #{tpu_custom_call.1} parent=11 // pred_check
          %p185 = pneg %p125
        $region26: #{tpu_custom_call.1} parent=11 // pred_check_branch
          %187 = sbr.rel (%p185) target = $region28
        $region27: #{tpu_custom_call.1} parent=11 // pred_region
          _
        $region28: #{tpu_custom_call.1} parent=11 // pred_fallthru
          _
      $region12: #{tpu_custom_call.1} parent=5 // pred_fallthru
        _
      %p188 = scmp.lt.s32.totalorder %s15, 2
      // Predicated region
      $region29: #{tpu_custom_call.1} parent=5 // pred_check
        %p189 = pneg %p188
      $region30: #{tpu_custom_call.1} parent=5 // pred_check_branch
        %191 = sbr.rel (%p189) target = $region32
      $region31: #{tpu_custom_call.1} parent=5 // pred_region
        // Predicated region
        $region33: #{tpu_custom_call.1} parent=31 // pred_check
          %p192 = pneg %p35
        $region34: #{tpu_custom_call.1} parent=31 // pred_check_branch
          %194 = sbr.rel (%p192) target = $region36
        $region35: #{tpu_custom_call.1} parent=31 // pred_region
          %p195 = scmp.lt.s32.totalorder %s15, 1
          %s196 = scalar_select %p195, %s15, 1
          %s197 = smul.addr %s196, 4
          %s198 = smul.addr %s197, 4
          %s199 = scalar_lea.vmem %s0, %s198
        $region36: #{tpu_custom_call.1} parent=31 // pred_fallthru
          _
      $region32: #{tpu_custom_call.1} parent=5 // pred_fallthru
        _
      %p200 = scmp.le.s32.totalorder 1, %s15
      %p201 = scmp.lt.s32.totalorder %s15, 3
      %p202 = pnand %p200, %p201
      %p203 = pneg %p202
      // Predicated region
      $region37: #{tpu_custom_call.1} parent=5 // pred_check
        _
      $region38: #{tpu_custom_call.1} parent=5 // pred_check_branch
        %205 = sbr.rel (%p202) target = $region40
      $region39: #{tpu_custom_call.1} parent=5 // pred_region
        %s206 = ssub.s32 %s15, 1
        // Predicated region
        $region41: #{tpu_custom_call.1} parent=39 // pred_check
          %p207 = pneg %p83
        $region42: #{tpu_custom_call.1} parent=39 // pred_check_branch
          %209 = sbr.rel (%p207) target = $region44
        $region43: #{tpu_custom_call.1} parent=39 // pred_region
          %210 = dma.done [#allocation3], 512
        $region44: #{tpu_custom_call.1} parent=39 // pred_fallthru
          _
        %p211 = scmp.lt.s32.totalorder %s20, 1
        %s212 = scalar_select %p211, %s20, 1
        %s213 = smul.addr %s212, 4
        %s214 = smul.addr %s213, 4
        %s215 = scalar_lea.vmem %s0, %s214
        %p216 = pneg %p41
        %p217 = pneg %p38
        %p218 = pneg %p62
        %p219 = pneg %p59
        %p220 = pneg %p83
        %p221 = pneg %p80
        %p222 = pneg %p104
        %p223 = pneg %p101
        %p224 = pneg %p125
        %p225 = pneg %p122
        %p226 = pneg %p151
        %p227 = pneg %p148
        %s228 = sand.u32 %s138, 1
        %s229 = scalar_lea.sflag [#allocation4], %s228
        %s230 = sand.u32 %s138, 1
        %s231 = smul.addr %s230, 8
        %s232 = scalar_lea.vmem [#allocation5], %s231
        %p233 = scmp.lt.s32.totalorder %s20, 1
        %s234 = scalar_select %p233, %s20, 1
        %s235 = smul.addr %s234, 4
        %s236 = smul.addr %s235, 4
        %s237 = scalar_lea.vmem %s0, %s236
        %v239 = vld [vmem:[%s4] sm:$0x1]
        %v240 = vld [vmem:[%s4 + $0x1] sm:$0x1]
        %v241 = vld [vmem:[%s4 + $0x2] sm:$0x1]
        %v242 = vld [vmem:[%s4 + $0x3] sm:$0x1]
        %v243 = vld [vmem:[%s237] sm:$0xf]
        %v244 = vld [vmem:[%s237 + $0x4] sm:$0xf]
        %v245 = vld [vmem:[%s237 + $0x8] sm:$0xf]
        %v246 = vld [vmem:[%s237 + $0xc] sm:$0xf]
        %v247 = vld [vmem:[%s1] sm:$0xf]
        %v248 = vld [vmem:[%s1 + $0x4] sm:$0xf]
        %v249 = vld [vmem:[%s1 + $0x8] sm:$0xf]
        %v250 = vld [vmem:[%s1 + $0xc] sm:$0xf]
        %v255 = vunpack.c.l.b16 %v243
        %v256 = vunpack.c.l.b16 %v244
        %v257 = vunpack.c.l.b16 %v245
        %v258 = vunpack.c.l.b16 %v246
        %v259 = vpack.c.b16 %v256, %v255
        %v260 = vpack.c.b16 %v258, %v257
        %v265 = vunpack.c.l.b16 %v247
        %v266 = vunpack.c.l.b16 %v248
        %v267 = vunpack.c.l.b16 %v249
        %v268 = vunpack.c.l.b16 %v250
        %v269 = vpack.c.b16 %v266, %v265
        %v270 = vpack.c.b16 %v268, %v267
        %vm273 = vcmask 261120
        %v275 = vsel %vm273, %v259, 0
        %v278 = vsel %vm273, %v260, 0
        %280 = vmatprep.subr.bf16.mxu0 0
        %281 = vmatpush1.bf16.msra.mxu0 %v269
        %282 = vmatprep.subr.bf16.mxu0 0
        %283 = vmatpush1.bf16.msra.mxu0 %v270
        %284 = vmatprep.subr.bf16.mxu0 0
        %285 = vmatpush1.bf16.msra.mxu0 0
        %286 = vmatprep.subr.bf16.mxu0 0
        %287 = vmatpush1.bf16.msra.mxu0 0
        %288 = vmatprep.subr.bf16.mxu0 0
        %289 = vmatpush1.bf16.msra.mxu0 0
        %290 = vmatprep.subr.bf16.mxu0 0
        %291 = vmatpush1.bf16.msra.mxu0 0
        %292 = vmatprep.subr.bf16.mxu0 0
        %293 = vmatpush1.bf16.msra.mxu0 0
        %294 = vmatprep.subr.bf16.mxu0 0
        %295 = vmatpush1.bf16.msra.mxu0 0
        %296 = vmatprep.subr.bf16.mxu0 0
        %297 = vmatpush1.bf16.msra.mxu0 0
        %298 = vmatprep.subr.bf16.mxu0 0
        %299 = vmatpush1.bf16.msra.mxu0 0
        %300 = vmatprep.subr.bf16.mxu0 0
        %301 = vmatpush1.bf16.msra.mxu0 0
        %302 = vmatprep.subr.bf16.mxu0 0
        %303 = vmatpush1.bf16.msra.mxu0 0
        %304 = vmatprep.subr.bf16.mxu0 0
        %305 = vmatpush1.bf16.msra.mxu0 0
        %306 = vmatprep.subr.bf16.mxu0 0
        %307 = vmatpush1.bf16.msra.mxu0 0
        %308 = vmatprep.subr.bf16.mxu0 0
        %309 = vmatpush1.bf16.msra.mxu0 0
        %310 = vmatprep.subr.bf16.mxu0 0
        %311 = vmatpush1.bf16.msra.mxu0 0
        %312 = vmatprep.mubr.bf16.mxu0 0
        %313 = vmatmul.mubr.bf16.gmra.mrb[0].mxu0 %v275
        %v314 = vpop.f32.mrb[0].mxu0
        %v315 = vadd.f32 0.0, %v314
        %v316 = vpop.f32.mrb[0].mxu0
        %v317 = vpop.f32.mrb[0].mxu0
        %v318 = vadd.f32 0.0, %v317
        %v319 = vpop.f32.mrb[0].mxu0
        %320 = vmatprep.mubr.bf16.mxu0 0
        %321 = vmatmul.mubr.bf16.gmra.mrb[0].mxu0 %v278
        %v322 = vpop.f32.mrb[0].mxu0
        %v323 = vadd.f32 0.0, %v322
        %v324 = vpop.f32.mrb[0].mxu0
        %v325 = vpop.f32.mrb[0].mxu0
        %v326 = vadd.f32 0.0, %v325
        %v327 = vpop.f32.mrb[0].mxu0
        %328 = vdwg.mxu0
        %vm329 = vcmask 523264
        %v330 = vsel %vm329, %v315, 0.0
        %v331 = vrot.slane %v330, 4
        %v332 = vadd.f32 %v330, %v331
        %v333 = vrot.slane %v332, 2
        %v334 = vadd.f32 %v332, %v333
        %v335 = vrot.slane %v334, 1
        %v336 = vadd.f32 %v334, %v335
        %v337 = vsel %vm329, %v318, 0.0
        %v338 = vrot.slane %v337, 4
        %v339 = vadd.f32 %v337, %v338
        %v340 = vrot.slane %v339, 2
        %v341 = vadd.f32 %v339, %v340
        %v342 = vrot.slane %v341, 1
        %v343 = vadd.f32 %v341, %v342
        %v344 = vsel %vm329, %v323, 0.0
        %v345 = vrot.slane %v344, 4
        %v346 = vadd.f32 %v344, %v345
        %v347 = vrot.slane %v346, 2
        %v348 = vadd.f32 %v346, %v347
        %v349 = vrot.slane %v348, 1
        %v350 = vadd.f32 %v348, %v349
        %v351 = vsel %vm329, %v326, 0.0
        %v352 = vrot.slane %v351, 4
        %v353 = vadd.f32 %v351, %v352
        %v354 = vrot.slane %v353, 2
        %v355 = vadd.f32 %v353, %v354
        %v356 = vrot.slane %v355, 1
        %v357 = vadd.f32 %v355, %v356
        %v358 = vrcp.pop 8.0
        %v359 = vmul.f32 %v336, %v358
        %v360 = vmul.f32 %v343, %v358
        %v361 = vmul.f32 %v350, %v358
        %v362 = vmul.f32 %v357, %v358
        %v363 = vmul.f32 %v315, %v315
        %v364 = vmul.f32 %v318, %v318
        %v365 = vmul.f32 %v323, %v323
        %v366 = vmul.f32 %v326, %v326
        %v367 = vsel %vm329, %v363, 0.0
        %v368 = vrot.slane %v367, 4
        %v369 = vadd.f32 %v367, %v368
        %v370 = vrot.slane %v369, 2
        %v371 = vadd.f32 %v369, %v370
        %v372 = vrot.slane %v371, 1
        %v373 = vadd.f32 %v371, %v372
        %v374 = vsel %vm329, %v364, 0.0
        %v375 = vrot.slane %v374, 4
        %v376 = vadd.f32 %v374, %v375
        %v377 = vrot.slane %v376, 2
        %v378 = vadd.f32 %v376, %v377
        %v379 = vrot.slane %v378, 1
        %v380 = vadd.f32 %v378, %v379
        %v381 = vsel %vm329, %v365, 0.0
        %v382 = vrot.slane %v381, 4
        %v383 = vadd.f32 %v381, %v382
        %v384 = vrot.slane %v383, 2
        %v385 = vadd.f32 %v383, %v384
        %v386 = vrot.slane %v385, 1
        %v387 = vadd.f32 %v385, %v386
        %v388 = vsel %vm329, %v366, 0.0
        %v389 = vrot.slane %v388, 4
        %v390 = vadd.f32 %v388, %v389
        %v391 = vrot.slane %v390, 2
        %v392 = vadd.f32 %v390, %v391
        %v393 = vrot.slane %v392, 1
        %v394 = vadd.f32 %v392, %v393
        %v395 = vmul.f32 %v373, %v358
        %v396 = vmul.f32 %v380, %v358
        %v397 = vmul.f32 %v387, %v358
        %v398 = vmul.f32 %v394, %v358
        %v399 = vmul.f32 %v359, %v359
        %v400 = vmul.f32 %v360, %v360
        %v401 = vmul.f32 %v361, %v361
        %v402 = vmul.f32 %v362, %v362
        %v403 = vsub.f32 %v395, %v399
        %v404 = vsub.f32 %v396, %v400
        %v405 = vsub.f32 %v397, %v401
        %v406 = vsub.f32 %v398, %v402
        %v407 = vmax.f32 %v403, 0.0
        %v408 = vmax.f32 %v404, 0.0
        %v409 = vmax.f32 %v405, 0.0
        %v410 = vmax.f32 %v406, 0.0
        %v411 = vadd.f32 %v407, 1e-05
        %v412 = vadd.f32 %v408, 1e-05
        %v413 = vadd.f32 %v409, 1e-05
        %v414 = vadd.f32 %v410, 1e-05
        %v415 = vrsqrt.pop %v411
        %v416 = vrsqrt.pop %v412
        %v417 = vrsqrt.pop %v413
        %v418 = vrsqrt.pop %v414
        %v419 = vmul.f32 %v415, %v239
        %v420 = vmul.f32 %v416, %v239
        %v421 = vmul.f32 %v417, %v239
        %v422 = vmul.f32 %v418, %v239
        %v423 = vmul.f32 %v359, %v419
        %v424 = vmul.f32 %v360, %v420
        %v425 = vmul.f32 %v361, %v421
        %v426 = vmul.f32 %v362, %v422
        %v427 = vsub.f32 %v240, %v423
        %v428 = vsub.f32 %v240, %v424
        %v429 = vsub.f32 %v240, %v425
        %v430 = vsub.f32 %v240, %v426
        %v431 = vlaneseq
        %v432 = vshrl.u32 %v431, 7
        %v433 = vsub.s32 0, %v432
        %v434 = vrot.slane %v419, %v433
        %v435 = vlaneseq
        %v436 = vshrl.u32 %v435, 7
        %v437 = vsub.s32 0, %v436
        %v438 = vrot.slane %v420, %v437
        %v439 = vlaneseq
        %v440 = vshrl.u32 %v439, 7
        %v441 = vsub.s32 0, %v440
        %v442 = vrot.slane %v421, %v441
        %v443 = vlaneseq
        %v444 = vshrl.u32 %v443, 7
        %v445 = vsub.s32 0, %v444
        %v446 = vrot.slane %v422, %v445
        %v447 = vmul.f32 %v315, %v434
        %v448 = vmul.f32 %v318, %v438
        %v449 = vmul.f32 %v323, %v442
        %v450 = vmul.f32 %v326, %v446
        %v451 = vlaneseq
        %v452 = vshrl.u32 %v451, 7
        %v453 = vsub.s32 0, %v452
        %v454 = vrot.slane %v427, %v453
        %v455 = vlaneseq
        %v456 = vshrl.u32 %v455, 7
        %v457 = vsub.s32 0, %v456
        %v458 = vrot.slane %v428, %v457
        %v459 = vlaneseq
        %v460 = vshrl.u32 %v459, 7
        %v461 = vsub.s32 0, %v460
        %v462 = vrot.slane %v429, %v461
        %v463 = vlaneseq
        %v464 = vshrl.u32 %v463, 7
        %v465 = vsub.s32 0, %v464
        %v466 = vrot.slane %v430, %v465
        %v467 = vadd.f32 %v447, %v454
        %v468 = vadd.f32 %v448, %v458
        %v469 = vadd.f32 %v449, %v462
        %v470 = vadd.f32 %v450, %v466
        %v471 = vmax.f32 %v467, 0.0
        %v472 = vmax.f32 %v468, 0.0
        %v473 = vmax.f32 %v469, 0.0
        %v474 = vmax.f32 %v470, 0.0
        %v475 = vpack.c.bf16 %v471, %v471
        %v476 = vpack.c.bf16 %v472, %v472
        %v477 = vpack.c.bf16 %v473, %v473
        %v478 = vpack.c.bf16 %v474, %v474
        %v479 = vld [vmem:[#allocation2] sm:$0xf]
        %v480 = vld [vmem:[#allocation2 + $0x4] sm:$0xf]
        %v481 = vld [vmem:[#allocation2 + $0x8] sm:$0xf]
        %v482 = vld [vmem:[#allocation2 + $0xc] sm:$0xf]
        %v483 = vld [vmem:[#allocation2 + $0x10] sm:$0xf]
        %v484 = vld [vmem:[#allocation2 + $0x14] sm:$0xf]
        %v485 = vld [vmem:[#allocation2 + $0x18] sm:$0xf]
        %v486 = vld [vmem:[#allocation2 + $0x1c] sm:$0xf]
        %v491 = vunpack.c.l.b16 %v475
        %v492 = vunpack.c.l.b16 %v476
        %v493 = vunpack.c.l.b16 %v477
        %v494 = vunpack.c.l.b16 %v478
        %v495 = vpack.c.b16 %v492, %v491
        %v496 = vpack.c.b16 %v494, %v493
        %v505 = vunpack.c.l.b16 %v479
        %v506 = vunpack.c.l.b16 %v480
        %v507 = vunpack.c.l.b16 %v481
        %v508 = vunpack.c.l.b16 %v482
        %v509 = vunpack.c.l.b16 %v483
        %v510 = vunpack.c.l.b16 %v484
        %v511 = vunpack.c.l.b16 %v485
        %v512 = vunpack.c.l.b16 %v486
        %v513 = vpack.c.b16 %v506, %v505
        %v514 = vpack.c.b16 %v508, %v507
        %v515 = vpack.c.b16 %v510, %v509
        %v516 = vpack.c.b16 %v512, %v511
        %v522 = vsel %vm329, %v495, 0
        %v525 = vsel %vm329, %v496, 0
        %527 = vmatprep.subr.bf16.mxu0 0
        %528 = vmatpush1.bf16.msra.mxu0 %v513
        %529 = vmatprep.subr.bf16.mxu0 0
        %530 = vmatpush1.bf16.msra.mxu0 %v514
        %531 = vmatprep.subr.bf16.mxu0 0
        %532 = vmatpush1.bf16.msra.mxu0 %v515
        %533 = vmatprep.subr.bf16.mxu0 0
        %534 = vmatpush1.bf16.msra.mxu0 %v516
        %535 = vmatprep.subr.bf16.mxu0 0
        %536 = vmatpush1.bf16.msra.mxu0 0
        %537 = vmatprep.subr.bf16.mxu0 0
        %538 = vmatpush1.bf16.msra.mxu0 0
        %539 = vmatprep.subr.bf16.mxu0 0
        %540 = vmatpush1.bf16.msra.mxu0 0
        %541 = vmatprep.subr.bf16.mxu0 0
        %542 = vmatpush1.bf16.msra.mxu0 0
        %543 = vmatprep.subr.bf16.mxu0 0
        %544 = vmatpush1.bf16.msra.mxu0 0
        %545 = vmatprep.subr.bf16.mxu0 0
        %546 = vmatpush1.bf16.msra.mxu0 0
        %547 = vmatprep.subr.bf16.mxu0 0
        %548 = vmatpush1.bf16.msra.mxu0 0
        %549 = vmatprep.subr.bf16.mxu0 0
        %550 = vmatpush1.bf16.msra.mxu0 0
        %551 = vmatprep.subr.bf16.mxu0 0
        %552 = vmatpush1.bf16.msra.mxu0 0
        %553 = vmatprep.subr.bf16.mxu0 0
        %554 = vmatpush1.bf16.msra.mxu0 0
        %555 = vmatprep.subr.bf16.mxu0 0
        %556 = vmatpush1.bf16.msra.mxu0 0
        %557 = vmatprep.subr.bf16.mxu0 0
        %558 = vmatpush1.bf16.msra.mxu0 0
        %559 = vmatprep.mubr.bf16.mxu0 0
        %560 = vmatmul.mubr.bf16.gmra.mrb[0].mxu0 %v522
        %v561 = vpop.f32.mrb[0].mxu0
        %v562 = vadd.f32 0.0, %v561
        %v563 = vpop.f32.mrb[0].mxu0
        %v564 = vpop.f32.mrb[0].mxu0
        %v565 = vadd.f32 0.0, %v564
        %v566 = vpop.f32.mrb[0].mxu0
        %567 = vmatprep.mubr.bf16.mxu0 0
        %568 = vmatmul.mubr.bf16.gmra.mrb[0].mxu0 %v525
        %v569 = vpop.f32.mrb[0].mxu0
        %v570 = vadd.f32 0.0, %v569
        %v571 = vpop.f32.mrb[0].mxu0
        %v572 = vpop.f32.mrb[0].mxu0
        %v573 = vadd.f32 0.0, %v572
        %v574 = vpop.f32.mrb[0].mxu0
        %575 = vdwg.mxu0
        %v576 = vsel %vm329, %v562, 0.0
        %v577 = vrot.slane %v576, 4
        %v578 = vadd.f32 %v576, %v577
        %v579 = vrot.slane %v578, 2
        %v580 = vadd.f32 %v578, %v579
        %v581 = vrot.slane %v580, 1
        %v582 = vadd.f32 %v580, %v581
        %v583 = vsel %vm329, %v565, 0.0
        %v584 = vrot.slane %v583, 4
        %v585 = vadd.f32 %v583, %v584
        %v586 = vrot.slane %v585, 2
        %v587 = vadd.f32 %v585, %v586
        %v588 = vrot.slane %v587, 1
        %v589 = vadd.f32 %v587, %v588
        %v590 = vsel %vm329, %v570, 0.0
        %v591 = vrot.slane %v590, 4
        %v592 = vadd.f32 %v590, %v591
        %v593 = vrot.slane %v592, 2
        %v594 = vadd.f32 %v592, %v593
        %v595 = vrot.slane %v594, 1
        %v596 = vadd.f32 %v594, %v595
        %v597 = vsel %vm329, %v573, 0.0
        %v598 = vrot.slane %v597, 4
        %v599 = vadd.f32 %v597, %v598
        %v600 = vrot.slane %v599, 2
        %v601 = vadd.f32 %v599, %v600
        %v602 = vrot.slane %v601, 1
        %v603 = vadd.f32 %v601, %v602
        %v604 = vmul.f32 %v582, %v358
        %v605 = vmul.f32 %v589, %v358
        %v606 = vmul.f32 %v596, %v358
        %v607 = vmul.f32 %v603, %v358
        %v608 = vmul.f32 %v562, %v562
        %v609 = vmul.f32 %v565, %v565
        %v610 = vmul.f32 %v570, %v570
        %v611 = vmul.f32 %v573, %v573
        %v612 = vsel %vm329, %v608, 0.0
        %v613 = vrot.slane %v612, 4
        %v614 = vadd.f32 %v612, %v613
        %v615 = vrot.slane %v614, 2
        %v616 = vadd.f32 %v614, %v615
        %v617 = vrot.slane %v616, 1
        %v618 = vadd.f32 %v616, %v617
        %v619 = vsel %vm329, %v609, 0.0
        %v620 = vrot.slane %v619, 4
        %v621 = vadd.f32 %v619, %v620
        %v622 = vrot.slane %v621, 2
        %v623 = vadd.f32 %v621, %v622
        %v624 = vrot.slane %v623, 1
        %v625 = vadd.f32 %v623, %v624
        %v626 = vsel %vm329, %v610, 0.0
        %v627 = vrot.slane %v626, 4
        %v628 = vadd.f32 %v626, %v627
        %v629 = vrot.slane %v628, 2
        %v630 = vadd.f32 %v628, %v629
        %v631 = vrot.slane %v630, 1
        %v632 = vadd.f32 %v630, %v631
        %v633 = vsel %vm329, %v611, 0.0
        %v634 = vrot.slane %v633, 4
        %v635 = vadd.f32 %v633, %v634
        %v636 = vrot.slane %v635, 2
        %v637 = vadd.f32 %v635, %v636
        %v638 = vrot.slane %v637, 1
        %v639 = vadd.f32 %v637, %v638
        %v640 = vmul.f32 %v618, %v358
        %v641 = vmul.f32 %v625, %v358
        %v642 = vmul.f32 %v632, %v358
        %v643 = vmul.f32 %v639, %v358
        %v644 = vmul.f32 %v604, %v604
        %v645 = vmul.f32 %v605, %v605
        %v646 = vmul.f32 %v606, %v606
        %v647 = vmul.f32 %v607, %v607
        %v648 = vsub.f32 %v640, %v644
        %v649 = vsub.f32 %v641, %v645
        %v650 = vsub.f32 %v642, %v646
        %v651 = vsub.f32 %v643, %v647
        %v652 = vmax.f32 %v648, 0.0
        %v653 = vmax.f32 %v649, 0.0
        %v654 = vmax.f32 %v650, 0.0
        %v655 = vmax.f32 %v651, 0.0
        %v656 = vadd.f32 %v652, 1e-05
        %v657 = vadd.f32 %v653, 1e-05
        %v658 = vadd.f32 %v654, 1e-05
        %v659 = vadd.f32 %v655, 1e-05
        %v660 = vrsqrt.pop %v656
        %v661 = vrsqrt.pop %v657
        %v662 = vrsqrt.pop %v658
        %v663 = vrsqrt.pop %v659
        %v664 = vmul.f32 %v660, %v241
        %v665 = vmul.f32 %v661, %v241
        %v666 = vmul.f32 %v662, %v241
        %v667 = vmul.f32 %v663, %v241
        %v668 = vmul.f32 %v604, %v664
        %v669 = vmul.f32 %v605, %v665
        %v670 = vmul.f32 %v606, %v666
        %v671 = vmul.f32 %v607, %v667
        %v672 = vsub.f32 %v242, %v668
        %v673 = vsub.f32 %v242, %v669
        %v674 = vsub.f32 %v242, %v670
        %v675 = vsub.f32 %v242, %v671
        %v676 = vlaneseq
        %v677 = vshrl.u32 %v676, 7
        %v678 = vsub.s32 0, %v677
        %v679 = vrot.slane %v664, %v678
        %v680 = vlaneseq
        %v681 = vshrl.u32 %v680, 7
        %v682 = vsub.s32 0, %v681
        %v683 = vrot.slane %v665, %v682
        %v684 = vlaneseq
        %v685 = vshrl.u32 %v684, 7
        %v686 = vsub.s32 0, %v685
        %v687 = vrot.slane %v666, %v686
        %v688 = vlaneseq
        %v689 = vshrl.u32 %v688, 7
        %v690 = vsub.s32 0, %v689
        %v691 = vrot.slane %v667, %v690
        %v692 = vmul.f32 %v562, %v679
        %v693 = vmul.f32 %v565, %v683
        %v694 = vmul.f32 %v570, %v687
        %v695 = vmul.f32 %v573, %v691
        %v696 = vlaneseq
        %v697 = vshrl.u32 %v696, 7
        %v698 = vsub.s32 0, %v697
        %v699 = vrot.slane %v672, %v698
        %v700 = vlaneseq
        %v701 = vshrl.u32 %v700, 7
        %v702 = vsub.s32 0, %v701
        %v703 = vrot.slane %v673, %v702
        %v704 = vlaneseq
        %v705 = vshrl.u32 %v704, 7
        %v706 = vsub.s32 0, %v705
        %v707 = vrot.slane %v674, %v706
        %v708 = vlaneseq
        %v709 = vshrl.u32 %v708, 7
        %v710 = vsub.s32 0, %v709
        %v711 = vrot.slane %v675, %v710
        %v712 = vadd.f32 %v692, %v699
        %v713 = vadd.f32 %v693, %v703
        %v714 = vadd.f32 %v694, %v707
        %v715 = vadd.f32 %v695, %v711
        %v716 = vmax.f32 %v712, 0.0
        %v717 = vmax.f32 %v713, 0.0
        %v718 = vmax.f32 %v714, 0.0
        %v719 = vmax.f32 %v715, 0.0
        %v720 = vpack.c.bf16 %v716, %v716
        %v721 = vpack.c.bf16 %v717, %v717
        %v722 = vpack.c.bf16 %v718, %v718
        %v723 = vpack.c.bf16 %v719, %v719
        %v724 = vld [vmem:[%s3] sm:$0xf]
        %v725 = vld [vmem:[%s3 + $0x4] sm:$0xf]
        %v726 = vld [vmem:[%s3 + $0x8] sm:$0xf]
        %v727 = vld [vmem:[%s3 + $0xc] sm:$0xf]
        %v728 = vld [vmem:[%s3 + $0x10] sm:$0xf]
        %v729 = vld [vmem:[%s3 + $0x14] sm:$0xf]
        %v730 = vld [vmem:[%s3 + $0x18] sm:$0xf]
        %v731 = vld [vmem:[%s3 + $0x1c] sm:$0xf]
        %v736 = vunpack.c.l.b16 %v720
        %v737 = vunpack.c.l.b16 %v721
        %v738 = vunpack.c.l.b16 %v722
        %v739 = vunpack.c.l.b16 %v723
        %v740 = vpack.c.b16 %v737, %v736
        %v741 = vpack.c.b16 %v739, %v738
        %v750 = vunpack.c.l.b16 %v724
        %v751 = vunpack.c.l.b16 %v725
        %v752 = vunpack.c.l.b16 %v726
        %v753 = vunpack.c.l.b16 %v727
        %v754 = vunpack.c.l.b16 %v728
        %v755 = vunpack.c.l.b16 %v729
        %v756 = vunpack.c.l.b16 %v730
        %v757 = vunpack.c.l.b16 %v731
        %v758 = vpack.c.b16 %v751, %v750
        %v759 = vpack.c.b16 %v753, %v752
        %v760 = vpack.c.b16 %v755, %v754
        %v761 = vpack.c.b16 %v757, %v756
        %v767 = vsel %vm329, %v740, 0
        %v770 = vsel %vm329, %v741, 0
        %772 = vmatprep.subr.bf16.mxu0 0
        %773 = vmatpush1.bf16.msra.mxu0 %v758
        %774 = vmatprep.subr.bf16.mxu0 0
        %775 = vmatpush1.bf16.msra.mxu0 %v759
        %776 = vmatprep.subr.bf16.mxu0 0
        %777 = vmatpush1.bf16.msra.mxu0 %v760
        %778 = vmatprep.subr.bf16.mxu0 0
        %779 = vmatpush1.bf16.msra.mxu0 %v761
        %780 = vmatprep.subr.bf16.mxu0 0
        %781 = vmatpush1.bf16.msra.mxu0 0
        %782 = vmatprep.subr.bf16.mxu0 0
        %783 = vmatpush1.bf16.msra.mxu0 0
        %784 = vmatprep.subr.bf16.mxu0 0
        %785 = vmatpush1.bf16.msra.mxu0 0
        %786 = vmatprep.subr.bf16.mxu0 0
        %787 = vmatpush1.bf16.msra.mxu0 0
        %788 = vmatprep.subr.bf16.mxu0 0
        %789 = vmatpush1.bf16.msra.mxu0 0
        %790 = vmatprep.subr.bf16.mxu0 0
        %791 = vmatpush1.bf16.msra.mxu0 0
        %792 = vmatprep.subr.bf16.mxu0 0
        %793 = vmatpush1.bf16.msra.mxu0 0
        %794 = vmatprep.subr.bf16.mxu0 0
        %795 = vmatpush1.bf16.msra.mxu0 0
        %796 = vmatprep.subr.bf16.mxu0 0
        %797 = vmatpush1.bf16.msra.mxu0 0
        %798 = vmatprep.subr.bf16.mxu0 0
        %799 = vmatpush1.bf16.msra.mxu0 0
        %800 = vmatprep.subr.bf16.mxu0 0
        %801 = vmatpush1.bf16.msra.mxu0 0
        %802 = vmatprep.subr.bf16.mxu0 0
        %803 = vmatpush1.bf16.msra.mxu0 0
        %804 = vmatprep.mubr.bf16.mxu0 0
        %805 = vmatmul.mubr.bf16.gmra.mrb[0].mxu0 %v767
        %v806 = vpop.f32.mrb[0].mxu0
        %v807 = vadd.f32 0.0, %v806
        %v808 = vpop.f32.mrb[0].mxu0
        %v809 = vpop.f32.mrb[0].mxu0
        %v810 = vadd.f32 0.0, %v809
        %v811 = vpop.f32.mrb[0].mxu0
        %812 = vmatprep.mubr.bf16.mxu0 0
        %813 = vmatmul.mubr.bf16.gmra.mrb[0].mxu0 %v770
        %v814 = vpop.f32.mrb[0].mxu0
        %v815 = vadd.f32 0.0, %v814
        %v816 = vpop.f32.mrb[0].mxu0
        %v817 = vpop.f32.mrb[0].mxu0
        %v818 = vadd.f32 0.0, %v817
        %v819 = vpop.f32.mrb[0].mxu0
        %820 = vdwg.mxu0
        %v821 = vsel %vm273, %v807, 0.0
        %v822 = vrot.slane %v821, 4
        %v823 = vadd.f32 %v821, %v822
        %v824 = vrot.slane %v823, 2
        %v825 = vadd.f32 %v823, %v824
        %v826 = vrot.slane %v825, 1
        %v827 = vadd.f32 %v825, %v826
        %v828 = vsel %vm273, %v810, 0.0
        %v829 = vrot.slane %v828, 4
        %v830 = vadd.f32 %v828, %v829
        %v831 = vrot.slane %v830, 2
        %v832 = vadd.f32 %v830, %v831
        %v833 = vrot.slane %v832, 1
        %v834 = vadd.f32 %v832, %v833
        %v835 = vsel %vm273, %v815, 0.0
        %v836 = vrot.slane %v835, 4
        %v837 = vadd.f32 %v835, %v836
        %v838 = vrot.slane %v837, 2
        %v839 = vadd.f32 %v837, %v838
        %v840 = vrot.slane %v839, 1
        %v841 = vadd.f32 %v839, %v840
        %v842 = vsel %vm273, %v818, 0.0
        %v843 = vrot.slane %v842, 4
        %v844 = vadd.f32 %v842, %v843
        %v845 = vrot.slane %v844, 2
        %v846 = vadd.f32 %v844, %v845
        %v847 = vrot.slane %v846, 1
        %v848 = vadd.f32 %v846, %v847
        %v849 = vmul.f32 %v827, %v358
        %v850 = vmul.f32 %v834, %v358
        %v851 = vmul.f32 %v841, %v358
        %v852 = vmul.f32 %v848, %v358
        %v853 = vmul.f32 %v807, %v807
        %v854 = vmul.f32 %v810, %v810
        %v855 = vmul.f32 %v815, %v815
        %v856 = vmul.f32 %v818, %v818
        %v857 = vsel %vm273, %v853, 0.0
        %v858 = vrot.slane %v857, 4
        %v859 = vadd.f32 %v857, %v858
        %v860 = vrot.slane %v859, 2
        %v861 = vadd.f32 %v859, %v860
        %v862 = vrot.slane %v861, 1
        %v863 = vadd.f32 %v861, %v862
        %v864 = vsel %vm273, %v854, 0.0
        %v865 = vrot.slane %v864, 4
        %v866 = vadd.f32 %v864, %v865
        %v867 = vrot.slane %v866, 2
        %v868 = vadd.f32 %v866, %v867
        %v869 = vrot.slane %v868, 1
        %v870 = vadd.f32 %v868, %v869
        %v871 = vsel %vm273, %v855, 0.0
        %v872 = vrot.slane %v871, 4
        %v873 = vadd.f32 %v871, %v872
        %v874 = vrot.slane %v873, 2
        %v875 = vadd.f32 %v873, %v874
        %v876 = vrot.slane %v875, 1
        %v877 = vadd.f32 %v875, %v876
        %v878 = vsel %vm273, %v856, 0.0
        %v879 = vrot.slane %v878, 4
        %v880 = vadd.f32 %v878, %v879
        %v881 = vrot.slane %v880, 2
        %v882 = vadd.f32 %v880, %v881
        %v883 = vrot.slane %v882, 1
        %v884 = vadd.f32 %v882, %v883
        %v885 = vmul.f32 %v863, %v358
        %v886 = vmul.f32 %v870, %v358
        %v887 = vmul.f32 %v877, %v358
        %v888 = vmul.f32 %v884, %v358
        %v889 = vmul.f32 %v849, %v849
        %v890 = vmul.f32 %v850, %v850
        %v891 = vmul.f32 %v851, %v851
        %v892 = vmul.f32 %v852, %v852
        %v893 = vsub.f32 %v885, %v889
        %v894 = vsub.f32 %v886, %v890
        %v895 = vsub.f32 %v887, %v891
        %v896 = vsub.f32 %v888, %v892
        %v897 = vmax.f32 %v893, 0.0
        %v898 = vmax.f32 %v894, 0.0
        %v899 = vmax.f32 %v895, 0.0
        %v900 = vmax.f32 %v896, 0.0
        %v901 = vadd.f32 %v897, 1e-05
        %v902 = vadd.f32 %v898, 1e-05
        %v903 = vadd.f32 %v899, 1e-05
        %v904 = vadd.f32 %v900, 1e-05
        %v905 = vrsqrt.pop %v901
        %v906 = vrsqrt.pop %v902
        %v907 = vrsqrt.pop %v903
        %v908 = vrsqrt.pop %v904
        %v909 = vmul.f32 %v849, %v905
        %v910 = vmul.f32 %v850, %v906
        %v911 = vmul.f32 %v851, %v907
        %v912 = vmul.f32 %v852, %v908
        %v913 = vsub.f32 0.0, %v909
        %v914 = vsub.f32 0.0, %v910
        %v915 = vsub.f32 0.0, %v911
        %v916 = vsub.f32 0.0, %v912
        %v917 = vmul.f32 %v807, %v905
        %v918 = vmul.f32 %v810, %v906
        %v919 = vmul.f32 %v815, %v907
        %v920 = vmul.f32 %v818, %v908
        %v921 = vadd.f32 %v917, %v913
        %v922 = vadd.f32 %v918, %v914
        %v923 = vadd.f32 %v919, %v915
        %v924 = vadd.f32 %v920, %v916
        %925 = vst.msk [vmem:[%s232] sm:$0xff] %vm273, %v921
        %927 = vrot.lane.b32.xlu0 %v922, 32
        %v928 = vpop.permute.xlu0 %927
        %vm930 = vcmask 523520
        %931 = vst.msk [vmem:[%s232] sm:$0xff] %vm930, %v928
        %933 = vrot.lane.b32.xlu0 %v923, 64
        %v934 = vpop.permute.xlu0 %933
        %vm936 = vcmask 785920
        %937 = vst.msk [vmem:[%s232] sm:$0xff] %vm936, %v934
        %939 = vrot.lane.b32.xlu0 %v924, 96
        %v940 = vpop.permute.xlu0 %939
        %vm942 = vcmask 1048320
        %943 = vst.msk [vmem:[%s232] sm:$0xff] %vm942, %v940
        %s944 = sand.u32 %s138, 1
        %s945 = scalar_lea.sflag [#allocation4], %s944
        %s946 = sand.u32 %s138, 1
        %s947 = smul.addr %s946, 8
        %s948 = scalar_lea.vmem [#allocation5], %s947
        // Predicated region
        $region45: #{tpu_custom_call.1} parent=39 // pred_check
          %p949 = pneg %p148
        $region46: #{tpu_custom_call.1} parent=39 // pred_check_branch
          %951 = sbr.rel (%p949) target = $region48
        $region47: #{tpu_custom_call.1} parent=39 // pred_region
          %s953 = ssub.s32 128, 128
          %954 = vsyncadd %s945, %s953
          %s955 = smul.addr %s20, 128
          %s956 = scalar_lea.hbm %s5, %s955
          %s958 = sshll.u32 %s948, 4
          %s959 = int_to_ptr.vmem [resolvable:$true] %s958
          %961 = dma.vmem_to_hbm [thread:$0]  %s959, 128, %s956, %s945
        $region48: #{tpu_custom_call.1} parent=39 // pred_fallthru
          _
      $region40: #{tpu_custom_call.1} parent=5 // pred_fallthru
        _
      %p962 = scmp.le.s32.totalorder 2, %s15
      // Predicated region
      $region49: #{tpu_custom_call.1} parent=5 // pred_check
        %p963 = pneg %p962
      $region50: #{tpu_custom_call.1} parent=5 // pred_check_branch
        %965 = sbr.rel (%p963) target = $region52
      $region51: #{tpu_custom_call.1} parent=5 // pred_region
        %s966 = ssub.s32 %s15, 2
        // Predicated region
        $region53: #{tpu_custom_call.1} parent=51 // pred_check
          %p967 = pneg %p154
        $region54: #{tpu_custom_call.1} parent=51 // pred_check_branch
          %969 = sbr.rel (%p967) target = $region56
        $region55: #{tpu_custom_call.1} parent=51 // pred_region
          %s970 = sand.u32 %s139, 1
          %s971 = scalar_lea.sflag [#allocation4], %s970
          %s972 = sand.u32 %s139, 1
          %s973 = smul.addr %s972, 8
          %s974 = scalar_lea.vmem [#allocation5], %s973
          %975 = dma.done %s971, 128
        $region56: #{tpu_custom_call.1} parent=51 // pred_fallthru
          _
      $region52: #{tpu_custom_call.1} parent=5 // pred_fallthru
        _
    $region6: #{tpu_custom_call.1} parent=1 // loop_footer
      %s19 = sadd.s32 1, %s15
    $region7: #{tpu_custom_call.1} parent=1 // loop_footer_branch
      %14 = sbr.rel target = $region3
    $region8: #{tpu_custom_call.1} parent=1 // loop_exit
      _
    %976 = vsyncpa [#allocation3], 1
    %s977 = scalar_lea.sflag [#allocation3], 1
    %978 = vsyncpa %s977, 1
    %979 = vsyncpa [#allocation4], 1
    %s980 = scalar_lea.sflag [#allocation4], 1
    %981 = vsyncpa %s980, 1

</llo_original>
